<compile_context>
chip_gen: v5e
topology: v5e:2x2
jax: 0.10.0
libtpu: 0.0.40
codegen_flags: <defaults>
</compile_context>

<pallas_src>
import functools

import jax
import jax.numpy as jnp
from jax.experimental import pallas as pl
from jax.experimental.pallas import tpu as pltpu


def _sagan_attention_kernel(x_full_ref,        # (1, N, C)  pixel-major, full rows (K/V side)
                            x_q_ref,           # (1, TQ, C) pixel-major query tile
                            x_cn_ref,          # (1, C, TQ) channel-major query tile (residual)
                            wf_ref, bf_ref,    # (C, mid) bf16, (1, mid) f32
                            wgh_ref, bgh_ref,  # (C, 2*mid) bf16, (1, 2*mid) f32
                            wv_ref, bv_ref,    # (C, mid) bf16 (gamma-folded), (C, 1) f32
                            *out_and_scratch,
                            return_attention):
    if return_attention:
        y_ref, attn_ref, g_sc, h_sc = out_and_scratch
    else:
        y_ref, g_sc, h_sc = out_and_scratch
        attn_ref = None

    mid = g_sc.shape[-1]

    # ---- once per batch: fused g/h projection over the full feature map ----
    @pl.when(pl.program_id(1) == 0)
    def _():
        x_full = x_full_ref[0].astype(jnp.bfloat16)                      # (N, C)
        gh = jnp.dot(x_full, wgh_ref[...],
                     preferred_element_type=jnp.float32) + bgh_ref[...]  # (N, 2*mid) f32
        g_sc[...] = gh[:, :mid].astype(g_sc.dtype)
        h_sc[...] = gh[:, mid:].astype(h_sc.dtype)

    # ---- per query tile -----------------------------------------------------
    x_q = x_q_ref[0].astype(jnp.bfloat16)                                # (TQ, C)
    fX = jnp.dot(x_q, wf_ref[...],
                 preferred_element_type=jnp.float32) + bf_ref[...]       # (TQ, mid) f32

    # s[i, j] = sum_m fX[i, m] * gX[j, m]   (fX @ gX^T without materializing .T)
    s = jax.lax.dot_general(fX.astype(jnp.bfloat16), g_sc[...],
                            dimension_numbers=(((1,), (1,)), ((), ())),
                            preferred_element_type=jnp.float32)          # (TQ, N)

    # Row softmax, f32 throughout; the normalization divide goes to the EUP.
    m = jnp.max(s, axis=-1, keepdims=True)
    p = jnp.exp(s - m)
    inv = pl.reciprocal(jnp.sum(p, axis=-1, keepdims=True), approx=True)
    a = p * inv                                                          # (TQ, N) f32

    # output (pixel-major) = A @ hX
    out = jnp.dot(a.astype(jnp.bfloat16), h_sc[...],
                  preferred_element_type=jnp.float32)                    # (TQ, mid) f32

    # Channel-major v-projection (gamma already folded into wv/bv):
    #   y[c, i] = sum_m wv[c, m] * out[i, m] + bv[c] + x[c, i]
    vout = jax.lax.dot_general(wv_ref[...], out.astype(jnp.bfloat16),
                               dimension_numbers=(((1,), (1,)), ((), ())),
                               preferred_element_type=jnp.float32)       # (C, TQ)
    y_ref[0] = (vout + bv_ref[...] + x_cn_ref[0]).astype(y_ref.dtype)

    if attn_ref is not None:
        attn_ref[0] = a.astype(attn_ref.dtype)


def self_attention_block(x_nchw, params, *, return_attention=True,
                         attention_dtype=jnp.float32, tq=None):
    """x_nchw: (B, C, H, W) float32.

    Returns (y_nchw, attention_map) when return_attention else y_nchw,
    matching the PyTorch module's forward semantics.
    """
    B, C, H, W = x_nchw.shape
    N = H * W
    mid = params["wf"].shape[0]

    # Query-tile size: 128 keeps per-step live VMEM at O(TQ*N) (fits v7x's
    # 64 MiB comfortably).  For very large N, shrink tq further / per chip.
    if tq is None:
        tq = 128 if (N % 128 == 0 and N > 128) else N
    assert N % tq == 0, "H*W must be divisible by the query tile size"
    nq = N // tq

    # Layouts: pixel-major (N, C) for projections (channels on lanes),
    # channel-major (C, N) for residual / output (pixels on lanes).
    # The channel-major view is a free reshape of NCHW.
    x_nc = jnp.transpose(x_nchw, (0, 2, 3, 1)).reshape(B, N, C)
    x_cn = x_nchw.reshape(B, C, N)

    # Pre-transpose / fuse weights once in XLA; bf16 matmul operands, f32 biases.
    cdt = jnp.bfloat16
    wf_t = params["wf"].T.astype(cdt)                                          # (C, mid)
    bf = params["bf"].astype(jnp.float32)                                      # (1, mid)
    wgh_t = jnp.concatenate([params["wg"], params["wh"]], axis=0).T.astype(cdt)  # (C, 2*mid)
    bgh = jnp.concatenate([params["bg"], params["bh"]], axis=1).astype(jnp.float32)  # (1, 2*mid)
    gamma = params["gamma"].astype(jnp.float32)[0]
    wv_g = (gamma * params["wv"]).astype(cdt)                                  # (C, mid)
    bv_g = (gamma * params["bv"]).reshape(C, 1).astype(jnp.float32)            # (C, 1)

    full = lambda shape: pl.BlockSpec(shape, lambda b, q: (0, 0))

    in_specs = [
        pl.BlockSpec((1, N, C), lambda b, q: (b, 0, 0)),    # x full rows (K/V side)
        pl.BlockSpec((1, tq, C), lambda b, q: (b, q, 0)),   # x query tile
        pl.BlockSpec((1, C, tq), lambda b, q: (b, 0, q)),   # x query tile, channel-major
        full((C, mid)), full((1, mid)),                     # f
        full((C, 2 * mid)), full((1, 2 * mid)),             # g + h fused
        full((C, mid)), full((C, 1)),                       # v (gamma-folded)
    ]
    out_shape = [jax.ShapeDtypeStruct((B, C, N), jnp.float32)]
    out_specs = [pl.BlockSpec((1, C, tq), lambda b, q: (b, 0, q))]
    if return_attention:
        out_shape.append(jax.ShapeDtypeStruct((B, N, N), attention_dtype))
        out_specs.append(pl.BlockSpec((1, tq, N), lambda b, q: (b, q, 0)))

    scratch_shapes = [pltpu.VMEM((N, mid), jnp.bfloat16),   # gX, resident per batch
                      pltpu.VMEM((N, mid), jnp.bfloat16)]   # hX, resident per batch

    # Explicit scoped-VMEM budget (defaults: 16 MiB v5e / 32 MiB v6e,v7x).
    est = (
        (2 * tq * N * 4 if return_attention else 0)   # attn out double-buffer
        + 4 * tq * N * 4                               # s / p / a + slack
        + 2 * N * max(C, 128) * 4                      # full-x double-buffer
        + 6 * tq * max(C, 128) * 4                     # x tiles + y out
        + 2 * N * max(mid, 128) * 2                    # bf16 g/h scratch
        + (4 << 20)                                    # weights, spills, headroom
    )
    vmem_limit = int(min(48 * 1024 * 1024, max(24 * 1024 * 1024, est)))

    grid_spec = pltpu.PrefetchScalarGridSpec(
        num_scalar_prefetch=0,
        grid=(B, nq),
        in_specs=in_specs,
        out_specs=out_specs,
        scratch_shapes=scratch_shapes,
    )

    kernel = functools.partial(_sagan_attention_kernel,
                               return_attention=return_attention)

    results = pl.pallas_call(
        kernel,
        out_shape=out_shape,
        grid_spec=grid_spec,
        compiler_params=pltpu.CompilerParams(
            dimension_semantics=("parallel", "arbitrary"),
            vmem_limit_bytes=vmem_limit),
    )(x_nc, x_nc, x_cn, wf_t, bf, wgh_t, bgh, wv_g, bv_g)

    y_nchw = results[0].reshape(B, C, H, W)   # channel-major -> NCHW is a free reshape
    if return_attention:
        return y_nchw, results[1]
    return y_nchw


def make_params(key, in_channels, k=2):
    mid = in_channels // k
    ks = jax.random.split(key, 8)
    scale_in = 1.0 / jnp.sqrt(in_channels)
    scale_mid = 1.0 / jnp.sqrt(mid)
    params = {
        "wf": jax.random.uniform(ks[0], (mid, in_channels), jnp.float32, -scale_in, scale_in),
        "bf": jax.random.uniform(ks[1], (1, mid), jnp.float32, -scale_in, scale_in),
        "wg": jax.random.uniform(ks[2], (mid, in_channels), jnp.float32, -scale_in, scale_in),
        "bg": jax.random.uniform(ks[3], (1, mid), jnp.float32, -scale_in, scale_in),
        "wh": jax.random.uniform(ks[4], (mid, in_channels), jnp.float32, -scale_in, scale_in),
        "bh": jax.random.uniform(ks[5], (1, mid), jnp.float32, -scale_in, scale_in),
        "wv": jax.random.uniform(ks[6], (in_channels, mid), jnp.float32, -scale_mid, scale_mid),
        "bv": jax.random.uniform(ks[7], (1, in_channels), jnp.float32, -scale_mid, scale_mid),
        # nn.Parameter(torch.zeros(1)) in the module; use a nonzero constant so
        # the attention path actually contributes in this synthetic test.
        "gamma": jnp.full((1,), 0.5, jnp.float32),
    }
    return params


def reference(x_nchw, params):
    """Pure-JAX f32 reference mirroring the PyTorch forward exactly."""
    B, C, H, W = x_nchw.shape
    N = H * W
    x = x_nchw.reshape(B, C, N)                                       # (B, C, N)
    conv = lambda w, b: jnp.einsum("mc,bcn->bmn", w, x) + b.T[None]   # 1x1 conv
    fX = conv(params["wf"], params["bf"])
    gX = conv(params["wg"], params["bg"])
    hX = conv(params["wh"], params["bh"])
    s = jnp.einsum("bmi,bmj->bij", fX, gX)                            # fX^T @ gX
    a = jax.nn.softmax(s, axis=-1)
    out = jnp.einsum("bmn,bin->bmi", hX, a)                           # hX @ A^T
    vout = jnp.einsum("cm,bmn->bcn", params["wv"], out) + params["bv"].T[None]
    y = params["gamma"][0] * vout + x
    return y.reshape(B, C, H, W), a


if __name__ == "__main__":
    key = jax.random.PRNGKey(0)
    k_x, k_p = jax.random.split(key)

    B, C, H, W = 2, 4, 16, 16
    x = jax.random.normal(k_x, (B, C, H, W), jnp.float32)
    params = make_params(k_p, C, k=2)

    y, attn = self_attention_block(x, params, return_attention=True)
    jax.block_until_ready((y, attn))

    y_ref, attn_ref = reference(x, params)
    # Tolerances account for bf16 MXU operands (f32 accumulate) and the
    # approximate EUP reciprocal in the softmax normalization.
    assert jnp.allclose(attn, attn_ref, atol=5e-3, rtol=5e-2), "attention mismatch"
    assert jnp.allclose(y, y_ref, atol=5e-2, rtol=5e-2), "output mismatch"

    # y-only fast path: skips materializing / writing the (B, N, N) attention map.
    y_only = self_attention_block(x, params, return_attention=False)
    jax.block_until_ready(y_only)
    assert jnp.allclose(y_only, y_ref, atol=5e-2, rtol=5e-2), "y-only path mismatch"

    print("KERNEL_OK")
</pallas_src>

<mosaic_0001>
module attributes {stable_mosaic.version = 11 : i64} {
  func.func @_sagan_attention_kernel(%arg0: i32, %arg1: i32, %arg2: memref<1x256x4xf32, #tpu.memory_space<vmem>>, %arg3: memref<1x128x4xf32, #tpu.memory_space<vmem>>, %arg4: memref<1x4x128xf32, #tpu.memory_space<vmem>>, %arg5: memref<4x2xbf16, #tpu.memory_space<vmem>>, %arg6: memref<1x2xf32, #tpu.memory_space<vmem>>, %arg7: memref<4x4xbf16, #tpu.memory_space<vmem>>, %arg8: memref<1x4xf32, #tpu.memory_space<vmem>>, %arg9: memref<4x2xbf16, #tpu.memory_space<vmem>>, %arg10: memref<4x1xf32, #tpu.memory_space<vmem>>, %arg11: memref<1x4x128xf32, #tpu.memory_space<vmem>>, %arg12: memref<1x128x256xf32, #tpu.memory_space<vmem>>, %arg13: memref<256x2xbf16, #tpu.memory_space<vmem>>, %arg14: memref<256x2xbf16, #tpu.memory_space<vmem>>) attributes {dimension_semantics = [#tpu.dimension_semantics<parallel>, #tpu.dimension_semantics<arbitrary>], iteration_bounds = array<i64: 2, 2>, scalar_prefetch = 0 : i64, scratch_operands = 2 : i64, tpu.core_type = #tpu.core_type<tc>, window_params = [{transform_indices = @transform_0, window_bounds = array<i64: 1, 256, 4>}, {transform_indices = @transform_1, window_bounds = array<i64: 1, 128, 4>}, {transform_indices = @transform_2, window_bounds = array<i64: 1, 4, 128>}, {pipeline_mode = #tpu.pipeline_mode<synchronous>, transform_indices = @transform_3, window_bounds = array<i64: 4, 2>}, {pipeline_mode = #tpu.pipeline_mode<synchronous>, transform_indices = @transform_4, window_bounds = array<i64: 1, 2>}, {pipeline_mode = #tpu.pipeline_mode<synchronous>, transform_indices = @transform_5, window_bounds = array<i64: 4, 4>}, {pipeline_mode = #tpu.pipeline_mode<synchronous>, transform_indices = @transform_6, window_bounds = array<i64: 1, 4>}, {pipeline_mode = #tpu.pipeline_mode<synchronous>, transform_indices = @transform_7, window_bounds = array<i64: 4, 2>}, {pipeline_mode = #tpu.pipeline_mode<synchronous>, transform_indices = @transform_8, window_bounds = array<i64: 4, 1>}, {transform_indices = @transform_9, window_bounds = array<i64: 1, 4, 128>}, {transform_indices = @transform_10, window_bounds = array<i64: 1, 128, 256>}]} {
    %c0_i32 = arith.constant 0 : i32
    %0 = arith.cmpi eq, %arg1, %c0_i32 : i32
    %1 = arith.extui %0 : i1 to i32
    %c0_i32_0 = arith.constant 0 : i32
    %2 = arith.cmpi ne, %1, %c0_i32_0 : i32
    scf.if %2 {
      %c0_29 = arith.constant 0 : index
      %c0_30 = arith.constant 0 : index
      %c0_31 = arith.constant 0 : index
      %42 = vector.load %arg2[%c0_29, %c0_30, %c0_31] : memref<1x256x4xf32, #tpu.memory_space<vmem>>, vector<1x256x4xf32>
      %43 = vector.shape_cast %42 : vector<1x256x4xf32> to vector<256x4xf32>
      %44 = arith.truncf %43 : vector<256x4xf32> to vector<256x4xbf16>
      %c0_32 = arith.constant 0 : index
      %c0_33 = arith.constant 0 : index
      %45 = vector.load %arg7[%c0_32, %c0_33] : memref<4x4xbf16, #tpu.memory_space<vmem>>, vector<4x4xbf16>
      %cst_34 = arith.constant dense<0.000000e+00> : vector<256x4xf32>
      %46 = tpu.matmul %44, %45, %cst_34 {dimension_numbers = #tpu.dot_dimension_numbers<[1], [0], [0], [1], [0, 0, 1, 1], [], []>} : vector<256x4xbf16>, vector<4x4xbf16>, vector<256x4xf32> -> vector<256x4xf32>
      %c0_35 = arith.constant 0 : index
      %c0_36 = arith.constant 0 : index
      %47 = vector.load %arg8[%c0_35, %c0_36] : memref<1x4xf32, #tpu.memory_space<vmem>>, vector<1x4xf32>
      %48 = vector.broadcast %47 : vector<1x4xf32> to vector<256x4xf32>
      %49 = arith.addf %46, %48 : vector<256x4xf32>
      %50 = vector.extract_strided_slice %49 {offsets = [0, 0], sizes = [256, 2], strides = [1, 1]} : vector<256x4xf32> to vector<256x2xf32>
      %51 = arith.truncf %50 : vector<256x2xf32> to vector<256x2xbf16>
      %c0_37 = arith.constant 0 : index
      %c0_38 = arith.constant 0 : index
      %52 = vector.load %arg13[%c0_37, %c0_38] : memref<256x2xbf16, #tpu.memory_space<vmem>>, vector<256x2xbf16>
      tpu.vector_store %arg13[%c0_37, %c0_38], %51 {strides = array<i32>} : memref<256x2xbf16, #tpu.memory_space<vmem>>, vector<256x2xbf16>,
      %53 = vector.extract_strided_slice %49 {offsets = [0, 2], sizes = [256, 2], strides = [1, 1]} : vector<256x4xf32> to vector<256x2xf32>
      %54 = arith.truncf %53 : vector<256x2xf32> to vector<256x2xbf16>
      %c0_39 = arith.constant 0 : index
      %c0_40 = arith.constant 0 : index
      %55 = vector.load %arg14[%c0_39, %c0_40] : memref<256x2xbf16, #tpu.memory_space<vmem>>, vector<256x2xbf16>
      tpu.vector_store %arg14[%c0_39, %c0_40], %54 {strides = array<i32>} : memref<256x2xbf16, #tpu.memory_space<vmem>>, vector<256x2xbf16>,
    } else {
    }
    %c0 = arith.constant 0 : index
    %c0_1 = arith.constant 0 : index
    %c0_2 = arith.constant 0 : index
    %3 = vector.load %arg3[%c0, %c0_1, %c0_2] : memref<1x128x4xf32, #tpu.memory_space<vmem>>, vector<1x128x4xf32>
    %4 = vector.shape_cast %3 : vector<1x128x4xf32> to vector<128x4xf32>
    %5 = arith.truncf %4 : vector<128x4xf32> to vector<128x4xbf16>
    %c0_3 = arith.constant 0 : index
    %c0_4 = arith.constant 0 : index
    %6 = vector.load %arg5[%c0_3, %c0_4] : memref<4x2xbf16, #tpu.memory_space<vmem>>, vector<4x2xbf16>
    %cst = arith.constant dense<0.000000e+00> : vector<128x2xf32>
    %7 = tpu.matmul %5, %6, %cst {dimension_numbers = #tpu.dot_dimension_numbers<[1], [0], [0], [1], [0, 0, 1, 1], [], []>} : vector<128x4xbf16>, vector<4x2xbf16>, vector<128x2xf32> -> vector<128x2xf32>
    %c0_5 = arith.constant 0 : index
    %c0_6 = arith.constant 0 : index
    %8 = vector.load %arg6[%c0_5, %c0_6] : memref<1x2xf32, #tpu.memory_space<vmem>>, vector<1x2xf32>
    %9 = vector.broadcast %8 : vector<1x2xf32> to vector<128x2xf32>
    %10 = arith.addf %7, %9 : vector<128x2xf32>
    %11 = arith.truncf %10 : vector<128x2xf32> to vector<128x2xbf16>
    %c0_7 = arith.constant 0 : index
    %c0_8 = arith.constant 0 : index
    %12 = vector.load %arg13[%c0_7, %c0_8] : memref<256x2xbf16, #tpu.memory_space<vmem>>, vector<256x2xbf16>
    %cst_9 = arith.constant dense<0.000000e+00> : vector<128x256xf32>
    %13 = tpu.matmul %11, %12, %cst_9 {dimension_numbers = #tpu.dot_dimension_numbers<[1], [1], [0], [0], [0, 0, 1, 0], [], []>} : vector<128x2xbf16>, vector<256x2xbf16>, vector<128x256xf32> -> vector<128x256xf32>
    %cst_10 = arith.constant dense<0xFF800000> : vector<128xf32>
    %14 = vector.multi_reduction <maximumf>, %13, %cst_10 [1] : vector<128x256xf32> to vector<128xf32>
    %15 = vector.shape_cast %14 : vector<128xf32> to vector<128x1xf32>
    %16 = vector.broadcast %15 : vector<128x1xf32> to vector<128x256xf32>
    %17 = arith.subf %13, %16 : vector<128x256xf32>
    %18 = math.exp %17 : vector<128x256xf32>
    %cst_11 = arith.constant dense<0.000000e+00> : vector<128xf32>
    %19 = vector.multi_reduction <add>, %18, %cst_11 [1] : vector<128x256xf32> to vector<128xf32>
    %20 = vector.shape_cast %19 : vector<128xf32> to vector<128x1xf32>
    %21 = tpu.reciprocal %20 {approx = true} : vector<128x1xf32> -> vector<128x1xf32>
    %22 = vector.broadcast %21 : vector<128x1xf32> to vector<128x256xf32>
    %23 = arith.mulf %18, %22 : vector<128x256xf32>
    %24 = arith.truncf %23 : vector<128x256xf32> to vector<128x256xbf16>
    %c0_12 = arith.constant 0 : index
    %c0_13 = arith.constant 0 : index
    %25 = vector.load %arg14[%c0_12, %c0_13] : memref<256x2xbf16, #tpu.memory_space<vmem>>, vector<256x2xbf16>
    %cst_14 = arith.constant dense<0.000000e+00> : vector<128x2xf32>
    %26 = tpu.matmul %24, %25, %cst_14 {dimension_numbers = #tpu.dot_dimension_numbers<[1], [0], [0], [1], [0, 0, 1, 1], [], []>} : vector<128x256xbf16>, vector<256x2xbf16>, vector<128x2xf32> -> vector<128x2xf32>
    %c0_15 = arith.constant 0 : index
    %c0_16 = arith.constant 0 : index
    %27 = vector.load %arg9[%c0_15, %c0_16] : memref<4x2xbf16, #tpu.memory_space<vmem>>, vector<4x2xbf16>
    %28 = arith.truncf %26 : vector<128x2xf32> to vector<128x2xbf16>
    %cst_17 = arith.constant dense<0.000000e+00> : vector<4x128xf32>
    %29 = tpu.matmul %27, %28, %cst_17 {dimension_numbers = #tpu.dot_dimension_numbers<[1], [1], [0], [0], [0, 0, 1, 0], [], []>} : vector<4x2xbf16>, vector<128x2xbf16>, vector<4x128xf32> -> vector<4x128xf32>
    %c0_18 = arith.constant 0 : index
    %c0_19 = arith.constant 0 : index
    %30 = vector.load %arg10[%c0_18, %c0_19] : memref<4x1xf32, #tpu.memory_space<vmem>>, vector<4x1xf32>
    %31 = vector.broadcast %30 : vector<4x1xf32> to vector<4x128xf32>
    %32 = arith.addf %29, %31 : vector<4x128xf32>
    %c0_20 = arith.constant 0 : index
    %c0_21 = arith.constant 0 : index
    %c0_22 = arith.constant 0 : index
    %33 = vector.load %arg4[%c0_20, %c0_21, %c0_22] : memref<1x4x128xf32, #tpu.memory_space<vmem>>, vector<1x4x128xf32>
    %34 = vector.shape_cast %33 : vector<1x4x128xf32> to vector<4x128xf32>
    %35 = arith.addf %32, %34 : vector<4x128xf32>
    %c0_23 = arith.constant 0 : index
    %c0_24 = arith.constant 0 : index
    %c0_25 = arith.constant 0 : index
    %36 = vector.load %arg11[%c0_23, %c0_24, %c0_25] : memref<1x4x128xf32, #tpu.memory_space<vmem>>, vector<1x4x128xf32>
    %37 = vector.shape_cast %36 : vector<1x4x128xf32> to vector<4x128xf32>
    %38 = vector.shape_cast %35 : vector<4x128xf32> to vector<1x4x128xf32>
    tpu.vector_store %arg11[%c0_23, %c0_24, %c0_25], %38 {strides = array<i32>} : memref<1x4x128xf32, #tpu.memory_space<vmem>>, vector<1x4x128xf32>,
    %c0_26 = arith.constant 0 : index
    %c0_27 = arith.constant 0 : index
    %c0_28 = arith.constant 0 : index
    %39 = vector.load %arg12[%c0_26, %c0_27, %c0_28] : memref<1x128x256xf32, #tpu.memory_space<vmem>>, vector<1x128x256xf32>
    %40 = vector.shape_cast %39 : vector<1x128x256xf32> to vector<128x256xf32>
    %41 = vector.shape_cast %23 : vector<128x256xf32> to vector<1x128x256xf32>
    tpu.vector_store %arg12[%c0_26, %c0_27, %c0_28], %41 {strides = array<i32>} : memref<1x128x256xf32, #tpu.memory_space<vmem>>, vector<1x128x256xf32>,
    return
  }
  func.func @transform_0(%arg0: i32, %arg1: i32) -> (i32, i32, i32) {
    %c0_i32 = arith.constant 0 : i32
    %c0_i32_0 = arith.constant 0 : i32
    %c0_i32_1 = arith.constant 0 : i32
    return %arg0, %c0_i32, %c0_i32_0 : i32, i32, i32
  }
  func.func @transform_1(%arg0: i32, %arg1: i32) -> (i32, i32, i32) {
    %c0_i32 = arith.constant 0 : i32
    %c0_i32_0 = arith.constant 0 : i32
    return %arg0, %arg1, %c0_i32 : i32, i32, i32
  }
  func.func @transform_2(%arg0: i32, %arg1: i32) -> (i32, i32, i32) {
    %c0_i32 = arith.constant 0 : i32
    %c0_i32_0 = arith.constant 0 : i32
    return %arg0, %c0_i32, %arg1 : i32, i32, i32
  }
  func.func @transform_3(%arg0: i32, %arg1: i32) -> (i32, i32) {
    %c0_i32 = arith.constant 0 : i32
    %c0_i32_0 = arith.constant 0 : i32
    %c0_i32_1 = arith.constant 0 : i32
    return %c0_i32, %c0_i32_0 : i32, i32
  }
  func.func @transform_4(%arg0: i32, %arg1: i32) -> (i32, i32) {
    %c0_i32 = arith.constant 0 : i32
    %c0_i32_0 = arith.constant 0 : i32
    %c0_i32_1 = arith.constant 0 : i32
    return %c0_i32, %c0_i32_0 : i32, i32
  }
  func.func @transform_5(%arg0: i32, %arg1: i32) -> (i32, i32) {
    %c0_i32 = arith.constant 0 : i32
    %c0_i32_0 = arith.constant 0 : i32
    %c0_i32_1 = arith.constant 0 : i32
    return %c0_i32, %c0_i32_0 : i32, i32
  }
  func.func @transform_6(%arg0: i32, %arg1: i32) -> (i32, i32) {
    %c0_i32 = arith.constant 0 : i32
    %c0_i32_0 = arith.constant 0 : i32
    %c0_i32_1 = arith.constant 0 : i32
    return %c0_i32, %c0_i32_0 : i32, i32
  }
  func.func @transform_7(%arg0: i32, %arg1: i32) -> (i32, i32) {
    %c0_i32 = arith.constant 0 : i32
    %c0_i32_0 = arith.constant 0 : i32
    %c0_i32_1 = arith.constant 0 : i32
    return %c0_i32, %c0_i32_0 : i32, i32
  }
  func.func @transform_8(%arg0: i32, %arg1: i32) -> (i32, i32) {
    %c0_i32 = arith.constant 0 : i32
    %c0_i32_0 = arith.constant 0 : i32
    %c0_i32_1 = arith.constant 0 : i32
    return %c0_i32, %c0_i32_0 : i32, i32
  }
  func.func @transform_9(%arg0: i32, %arg1: i32) -> (i32, i32, i32) {
    %c0_i32 = arith.constant 0 : i32
    %c0_i32_0 = arith.constant 0 : i32
    return %arg0, %c0_i32, %arg1 : i32, i32, i32
  }
  func.func @transform_10(%arg0: i32, %arg1: i32) -> (i32, i32, i32) {
    %c0_i32 = arith.constant 0 : i32
    %c0_i32_0 = arith.constant 0 : i32
    return %arg0, %arg1, %c0_i32 : i32, i32, i32
  }
}

</mosaic_0001>

<llo_original>
// kernel: tpu_custom_call.1
$region0: #{tpu_custom_call.1}
  #allocation0 [shape = 'u32[]', space=smem, size = 0x4, offset = 0x4, fixed_abs, tag = 'smem constant byte address 0x4 - core index']
  #allocation1 [shape = 'u32[72,128]{1,0:T(1,128)}', space=vmem, size = 0x9000, scoped, tag = 'internal scratch']
  #allocation2 [shape = 'bf16[256,2]{1,0:T(8,128)(2,1)}', space=vmem, size = 0x10000, scoped, tag = 'scratch operand']
  #allocation3 [shape = 'bf16[256,2]{1,0:T(8,128)(2,1)}', space=vmem, size = 0x10000, scoped, tag = 'scratch operand']
  %s0 = inlined_call_operand.vmem [shape: f32[2,256,4], index: 0, kind: input, shape index: {}]
  %s1 = inlined_call_operand.vmem [shape: f32[2,256,4], index: 1, kind: input, shape index: {}]
  %s2 = inlined_call_operand.vmem [shape: f32[2,4,256], index: 2, kind: input, shape index: {}]
  %s3 = inlined_call_operand.vmem [shape: bf16[4,2], index: 3, kind: input, shape index: {}]
  %s4 = inlined_call_operand.vmem [shape: f32[1,2], index: 4, kind: input, shape index: {}]
  %s5 = inlined_call_operand.vmem [shape: bf16[4,4], index: 5, kind: input, shape index: {}]
  %s6 = inlined_call_operand.vmem [shape: f32[1,4], index: 6, kind: input, shape index: {}]
  %s7 = inlined_call_operand.vmem [shape: bf16[4,2], index: 7, kind: input, shape index: {}]
  %s8 = inlined_call_operand.vmem [shape: f32[4,1], index: 8, kind: input, shape index: {}]
  %s9 = inlined_call_operand.hbm [shape: f32[2,4,256], index: 9, kind: output, shape index: {0}]
  %s10 = inlined_call_operand.hbm [shape: f32[2,256,256], index: 10, kind: output, shape index: {1}]
  %11 = xla_tuple %s9, %s10
  %s12 = sld [smem:[#allocation0]]
  $region81: #{tpu_custom_call.1} parent=0
    _
  %s14 = ssub.s32 1, %s12
  %s15 = scalar_select 0, %s14, %s12
  $region1: #{tpu_custom_call.1} parent=0
    #allocation4 [shape = 'u8[4096]{0}', space=vmem, size = 0x1000, scoped, tag = 'output window, operand 0']
    #allocation5 [shape = 's32[2]{0}', space=sflag, size = 0x8, scoped, tag = 'scoped memory for tpu_custom_call.1']
    #allocation6 [shape = 'u8[262144]{0}', space=vmem, size = 0x40000, scoped, tag = 'output window, operand 1']
    #allocation7 [shape = 's32[2]{0}', space=sflag, size = 0x8, scoped, tag = 'scoped memory for tpu_custom_call.1']
    %16 = vsyncpa [#allocation5], 0
    %s17 = scalar_lea.sflag [#allocation5], 1
    %18 = vsyncpa %s17, 0
    %19 = vsyncpa [#allocation7], 0
    %s20 = scalar_lea.sflag [#allocation7], 1
    %21 = vsyncpa %s20, 0
    loop: start=0, step=1, limit=6
    $region2: #{tpu_custom_call.1} parent=1 // loop_pre_header
      _
    $region3: #{tpu_custom_call.1} parent=1 // loop_header
      %s23 = sphi 0, %s27
      %p24 = scmp.ge.s32.totalorder %s23, 6
      %s30 = sphi 0, %s42
      %s31 = sphi 0, %s38
      %s32 = sphi 0, %s30
      %s33 = sphi 0, %s31
      %s34 = sphi 0, %s32
      %s35 = sphi 0, %s33
      %s45 = sphi 0, %s47
      %s48 = sphi 0, %s45
      %s49 = sphi 0, %s48
      %s65 = sphi 0, %s49
      %s73 = sphi 0, %s75
      %s76 = sphi 0, %s73
      %s77 = sphi 0, %s76
      %s93 = sphi 0, %s77
      %s101 = sphi 0, %s103
      %s104 = sphi 0, %s101
      %s105 = sphi 0, %s104
      %s121 = sphi 0, %s105
      %s125 = sphi 0, %s125
      %s127 = sphi 0, %s125
      %s128 = sphi 0, %s127
      %s142 = sphi 0, %s128
      %s146 = sphi 0, %s146
      %s148 = sphi 0, %s146
      %s149 = sphi 0, %s148
      %s163 = sphi 0, %s149
      %s167 = sphi 0, %s167
      %s169 = sphi 0, %s167
      %s170 = sphi 0, %s169
      %s184 = sphi 0, %s170
      %s188 = sphi 0, %s188
      %s190 = sphi 0, %s188
      %s191 = sphi 0, %s190
      %s205 = sphi 0, %s191
      %s209 = sphi 0, %s209
      %s211 = sphi 0, %s209
      %s212 = sphi 0, %s211
      %s226 = sphi 0, %s212
      %s230 = sphi 0, %s230
      %s232 = sphi 0, %s230
      %s233 = sphi 0, %s232
      %s247 = sphi 0, %s233
      %s255 = sphi 0, %s257
      %s258 = sphi 0, %s255
      %s259 = sphi 0, %s258
      %s275 = sphi 0, %s259
      %s283 = sphi 0, %s285
      %s286 = sphi 0, %s283
      %s287 = sphi 0, %s286
      %s303 = sphi 0, %s287
    $region4: #{tpu_custom_call.1} parent=1 // loop_header_branch
      %26 = sbr.rel (%p24) target = $region8
    $region5: #{tpu_custom_call.1} parent=1 // loop_body
      %s28 = ssub.s32 %s23, 1
      %s29 = ssub.s32 %s23, 2
      %s36 = sadd.s32 1, %s31
      %p37 = scmp.ge.s32.totalorder %s36, 2
      %s38 = scalar_select %p37, 0, %s36
      %s39 = sadd.s32 1, %s30
      %s40 = scalar_select %p37, %s39, %s30
      %p41 = scmp.ge.s32.totalorder %s40, 2
      %s42 = scalar_select %p41, 0, %s40
      %s43 = ssub.s32 %s30, %s42
      %p44 = scmp.eq.s32.totalorder %s43, 0
      %s46 = sadd.s32 %s45, 1
      %s47 = scalar_select %p44, %s45, %s46
      %p50 = pneg %p44
      %p51 = scmp.eq.s32.totalorder %s23, 3
      %p52 = por %p50, %p51
      %p53 = scmp.ne.s32.totalorder %s45, %s48
      %p54 = scmp.eq.s32.totalorder %s23, 0
      %p55 = por %p53, %p54
      %p56 = scmp.ne.s32.totalorder %s45, %s48
      %p57 = scmp.eq.s32.totalorder %s28, 3
      %p58 = por %p56, %p57
      %p59 = scmp.ne.s32.totalorder %s48, %s49
      %p60 = scmp.eq.s32.totalorder %s28, 0
      %p61 = por %p59, %p60
      %p62 = scmp.ne.s32.totalorder %s48, %s49
      %p63 = scmp.eq.s32.totalorder %s29, 3
      %p64 = por %p62, %p63
      %p66 = scmp.ne.s32.totalorder %s49, %s65
      %p67 = scmp.eq.s32.totalorder %s29, 0
      %p68 = por %p66, %p67
      %s69 = ssub.s32 %s30, %s42
      %s70 = ssub.s32 %s31, %s38
      %s71 = sor.u32 %s69, %s70
      %p72 = scmp.eq.s32.totalorder %s71, 0
      %s74 = sadd.s32 %s73, 1
      %s75 = scalar_select %p72, %s73, %s74
      %p78 = pneg %p72
      %p79 = scmp.eq.s32.totalorder %s23, 3
      %p80 = por %p78, %p79
      %p81 = scmp.ne.s32.totalorder %s73, %s76
      %p82 = scmp.eq.s32.totalorder %s23, 0
      %p83 = por %p81, %p82
      %p84 = scmp.ne.s32.totalorder %s73, %s76
      %p85 = scmp.eq.s32.totalorder %s28, 3
      %p86 = por %p84, %p85
      %p87 = scmp.ne.s32.totalorder %s76, %s77
      %p88 = scmp.eq.s32.totalorder %s28, 0
      %p89 = por %p87, %p88
      %p90 = scmp.ne.s32.totalorder %s76, %s77
      %p91 = scmp.eq.s32.totalorder %s29, 3
      %p92 = por %p90, %p91
      %p94 = scmp.ne.s32.totalorder %s77, %s93
      %p95 = scmp.eq.s32.totalorder %s29, 0
      %p96 = por %p94, %p95
      %s97 = ssub.s32 %s30, %s42
      %s98 = ssub.s32 %s31, %s38
      %s99 = sor.u32 %s97, %s98
      %p100 = scmp.eq.s32.totalorder %s99, 0
      %s102 = sadd.s32 %s101, 1
      %s103 = scalar_select %p100, %s101, %s102
      %p106 = pneg %p100
      %p107 = scmp.eq.s32.totalorder %s23, 3
      %p108 = por %p106, %p107
      %p109 = scmp.ne.s32.totalorder %s101, %s104
      %p110 = scmp.eq.s32.totalorder %s23, 0
      %p111 = por %p109, %p110
      %p112 = scmp.ne.s32.totalorder %s101, %s104
      %p113 = scmp.eq.s32.totalorder %s28, 3
      %p114 = por %p112, %p113
      %p115 = scmp.ne.s32.totalorder %s104, %s105
      %p116 = scmp.eq.s32.totalorder %s28, 0
      %p117 = por %p115, %p116
      %p118 = scmp.ne.s32.totalorder %s104, %s105
      %p119 = scmp.eq.s32.totalorder %s29, 3
      %p120 = por %p118, %p119
      %p122 = scmp.ne.s32.totalorder %s105, %s121
      %p123 = scmp.eq.s32.totalorder %s29, 0
      %p124 = por %p122, %p123
      %s126 = sadd.s32 %s125, 1
      %p129 = scmp.eq.s32.totalorder %s23, 3
      %p130 = scmp.ne.s32.totalorder %s125, %s127
      %p131 = scmp.eq.s32.totalorder %s23, 0
      %p132 = por %p130, %p131
      %p133 = scmp.ne.s32.totalorder %s125, %s127
      %p134 = scmp.eq.s32.totalorder %s28, 3
      %p135 = por %p133, %p134
      %p136 = scmp.ne.s32.totalorder %s127, %s128
      %p137 = scmp.eq.s32.totalorder %s28, 0
      %p138 = por %p136, %p137
      %p139 = scmp.ne.s32.totalorder %s127, %s128
      %p140 = scmp.eq.s32.totalorder %s29, 3
      %p141 = por %p139, %p140
      %p143 = scmp.ne.s32.totalorder %s128, %s142
      %p144 = scmp.eq.s32.totalorder %s29, 0
      %p145 = por %p143, %p144
      %s147 = sadd.s32 %s146, 1
      %p150 = scmp.eq.s32.totalorder %s23, 3
      %p151 = scmp.ne.s32.totalorder %s146, %s148
      %p152 = scmp.eq.s32.totalorder %s23, 0
      %p153 = por %p151, %p152
      %p154 = scmp.ne.s32.totalorder %s146, %s148
      %p155 = scmp.eq.s32.totalorder %s28, 3
      %p156 = por %p154, %p155
      %p157 = scmp.ne.s32.totalorder %s148, %s149
      %p158 = scmp.eq.s32.totalorder %s28, 0
      %p159 = por %p157, %p158
      %p160 = scmp.ne.s32.totalorder %s148, %s149
      %p161 = scmp.eq.s32.totalorder %s29, 3
      %p162 = por %p160, %p161
      %p164 = scmp.ne.s32.totalorder %s149, %s163
      %p165 = scmp.eq.s32.totalorder %s29, 0
      %p166 = por %p164, %p165
      %s168 = sadd.s32 %s167, 1
      %p171 = scmp.eq.s32.totalorder %s23, 3
      %p172 = scmp.ne.s32.totalorder %s167, %s169
      %p173 = scmp.eq.s32.totalorder %s23, 0
      %p174 = por %p172, %p173
      %p175 = scmp.ne.s32.totalorder %s167, %s169
      %p176 = scmp.eq.s32.totalorder %s28, 3
      %p177 = por %p175, %p176
      %p178 = scmp.ne.s32.totalorder %s169, %s170
      %p179 = scmp.eq.s32.totalorder %s28, 0
      %p180 = por %p178, %p179
      %p181 = scmp.ne.s32.totalorder %s169, %s170
      %p182 = scmp.eq.s32.totalorder %s29, 3
      %p183 = por %p181, %p182
      %p185 = scmp.ne.s32.totalorder %s170, %s184
      %p186 = scmp.eq.s32.totalorder %s29, 0
      %p187 = por %p185, %p186
      %s189 = sadd.s32 %s188, 1
      %p192 = scmp.eq.s32.totalorder %s23, 3
      %p193 = scmp.ne.s32.totalorder %s188, %s190
      %p194 = scmp.eq.s32.totalorder %s23, 0
      %p195 = por %p193, %p194
      %p196 = scmp.ne.s32.totalorder %s188, %s190
      %p197 = scmp.eq.s32.totalorder %s28, 3
      %p198 = por %p196, %p197
      %p199 = scmp.ne.s32.totalorder %s190, %s191
      %p200 = scmp.eq.s32.totalorder %s28, 0
      %p201 = por %p199, %p200
      %p202 = scmp.ne.s32.totalorder %s190, %s191
      %p203 = scmp.eq.s32.totalorder %s29, 3
      %p204 = por %p202, %p203
      %p206 = scmp.ne.s32.totalorder %s191, %s205
      %p207 = scmp.eq.s32.totalorder %s29, 0
      %p208 = por %p206, %p207
      %s210 = sadd.s32 %s209, 1
      %p213 = scmp.eq.s32.totalorder %s23, 3
      %p214 = scmp.ne.s32.totalorder %s209, %s211
      %p215 = scmp.eq.s32.totalorder %s23, 0
      %p216 = por %p214, %p215
      %p217 = scmp.ne.s32.totalorder %s209, %s211
      %p218 = scmp.eq.s32.totalorder %s28, 3
      %p219 = por %p217, %p218
      %p220 = scmp.ne.s32.totalorder %s211, %s212
      %p221 = scmp.eq.s32.totalorder %s28, 0
      %p222 = por %p220, %p221
      %p223 = scmp.ne.s32.totalorder %s211, %s212
      %p224 = scmp.eq.s32.totalorder %s29, 3
      %p225 = por %p223, %p224
      %p227 = scmp.ne.s32.totalorder %s212, %s226
      %p228 = scmp.eq.s32.totalorder %s29, 0
      %p229 = por %p227, %p228
      %s231 = sadd.s32 %s230, 1
      %p234 = scmp.eq.s32.totalorder %s23, 3
      %p235 = scmp.ne.s32.totalorder %s230, %s232
      %p236 = scmp.eq.s32.totalorder %s23, 0
      %p237 = por %p235, %p236
      %p238 = scmp.ne.s32.totalorder %s230, %s232
      %p239 = scmp.eq.s32.totalorder %s28, 3
      %p240 = por %p238, %p239
      %p241 = scmp.ne.s32.totalorder %s232, %s233
      %p242 = scmp.eq.s32.totalorder %s28, 0
      %p243 = por %p241, %p242
      %p244 = scmp.ne.s32.totalorder %s232, %s233
      %p245 = scmp.eq.s32.totalorder %s29, 3
      %p246 = por %p244, %p245
      %p248 = scmp.ne.s32.totalorder %s233, %s247
      %p249 = scmp.eq.s32.totalorder %s29, 0
      %p250 = por %p248, %p249
      %s251 = ssub.s32 %s30, %s42
      %s252 = ssub.s32 %s31, %s38
      %s253 = sor.u32 %s251, %s252
      %p254 = scmp.eq.s32.totalorder %s253, 0
      %s256 = sadd.s32 %s255, 1
      %s257 = scalar_select %p254, %s255, %s256
      %p260 = pneg %p254
      %p261 = scmp.eq.s32.totalorder %s23, 3
      %p262 = por %p260, %p261
      %p263 = scmp.ne.s32.totalorder %s255, %s258
      %p264 = scmp.eq.s32.totalorder %s23, 0
      %p265 = por %p263, %p264
      %p266 = scmp.ne.s32.totalorder %s255, %s258
      %p267 = scmp.eq.s32.totalorder %s28, 3
      %p268 = por %p266, %p267
      %p269 = scmp.ne.s32.totalorder %s258, %s259
      %p270 = scmp.eq.s32.totalorder %s28, 0
      %p271 = por %p269, %p270
      %p272 = scmp.ne.s32.totalorder %s258, %s259
      %p273 = scmp.eq.s32.totalorder %s29, 3
      %p274 = por %p272, %p273
      %p276 = scmp.ne.s32.totalorder %s259, %s275
      %p277 = scmp.eq.s32.totalorder %s29, 0
      %p278 = por %p276, %p277
      %s279 = ssub.s32 %s30, %s42
      %s280 = ssub.s32 %s31, %s38
      %s281 = sor.u32 %s279, %s280
      %p282 = scmp.eq.s32.totalorder %s281, 0
      %s284 = sadd.s32 %s283, 1
      %s285 = scalar_select %p282, %s283, %s284
      %p288 = pneg %p282
      %p289 = scmp.eq.s32.totalorder %s23, 3
      %p290 = por %p288, %p289
      %p291 = scmp.ne.s32.totalorder %s283, %s286
      %p292 = scmp.eq.s32.totalorder %s23, 0
      %p293 = por %p291, %p292
      %p294 = scmp.ne.s32.totalorder %s283, %s286
      %p295 = scmp.eq.s32.totalorder %s28, 3
      %p296 = por %p294, %p295
      %p297 = scmp.ne.s32.totalorder %s286, %s287
      %p298 = scmp.eq.s32.totalorder %s28, 0
      %p299 = por %p297, %p298
      %p300 = scmp.ne.s32.totalorder %s286, %s287
      %p301 = scmp.eq.s32.totalorder %s29, 3
      %p302 = por %p300, %p301
      %p304 = scmp.ne.s32.totalorder %s287, %s303
      %p305 = scmp.eq.s32.totalorder %s29, 0
      %p306 = por %p304, %p305
      %p307 = scmp.le.s32.totalorder 1, %s23
      %p308 = scmp.lt.s32.totalorder %s23, 5
      %p309 = pnand %p307, %p308
      %p310 = pneg %p309
      // Predicated region
      $region9: #{tpu_custom_call.1} parent=5 // pred_check
        _
      $region10: #{tpu_custom_call.1} parent=5 // pred_check_branch
        %312 = sbr.rel (%p309) target = $region12
      $region11: #{tpu_custom_call.1} parent=5 // pred_region
        %s313 = ssub.s32 %s23, 1
        // Predicated region
        $region13: #{tpu_custom_call.1} parent=11 // pred_check
          %p314 = pneg %p138
        $region14: #{tpu_custom_call.1} parent=11 // pred_check_branch
          %316 = sbr.rel (%p314) target = $region16
        $region15: #{tpu_custom_call.1} parent=11 // pred_region
          _
        $region16: #{tpu_custom_call.1} parent=11 // pred_fallthru
          _
        // Predicated region
        $region17: #{tpu_custom_call.1} parent=11 // pred_check
          %p317 = pneg %p159
        $region18: #{tpu_custom_call.1} parent=11 // pred_check_branch
          %319 = sbr.rel (%p317) target = $region20
        $region19: #{tpu_custom_call.1} parent=11 // pred_region
          _
        $region20: #{tpu_custom_call.1} parent=11 // pred_fallthru
          _
        // Predicated region
        $region21: #{tpu_custom_call.1} parent=11 // pred_check
          %p320 = pneg %p180
        $region22: #{tpu_custom_call.1} parent=11 // pred_check_branch
          %322 = sbr.rel (%p320) target = $region24
        $region23: #{tpu_custom_call.1} parent=11 // pred_region
          _
        $region24: #{tpu_custom_call.1} parent=11 // pred_fallthru
          _
        // Predicated region
        $region25: #{tpu_custom_call.1} parent=11 // pred_check
          %p323 = pneg %p201
        $region26: #{tpu_custom_call.1} parent=11 // pred_check_branch
          %325 = sbr.rel (%p323) target = $region28
        $region27: #{tpu_custom_call.1} parent=11 // pred_region
          _
        $region28: #{tpu_custom_call.1} parent=11 // pred_fallthru
          _
        // Predicated region
        $region29: #{tpu_custom_call.1} parent=11 // pred_check
          %p326 = pneg %p222
        $region30: #{tpu_custom_call.1} parent=11 // pred_check_branch
          %328 = sbr.rel (%p326) target = $region32
        $region31: #{tpu_custom_call.1} parent=11 // pred_region
          _
        $region32: #{tpu_custom_call.1} parent=11 // pred_fallthru
          _
        // Predicated region
        $region33: #{tpu_custom_call.1} parent=11 // pred_check
          %p329 = pneg %p243
        $region34: #{tpu_custom_call.1} parent=11 // pred_check_branch
          %331 = sbr.rel (%p329) target = $region36
        $region35: #{tpu_custom_call.1} parent=11 // pred_region
          _
        $region36: #{tpu_custom_call.1} parent=11 // pred_fallthru
          _
      $region12: #{tpu_custom_call.1} parent=5 // pred_fallthru
        _
      %p332 = scmp.lt.s32.totalorder %s23, 4
      // Predicated region
      $region37: #{tpu_custom_call.1} parent=5 // pred_check
        %p333 = pneg %p332
      $region38: #{tpu_custom_call.1} parent=5 // pred_check_branch
        %335 = sbr.rel (%p333) target = $region40
      $region39: #{tpu_custom_call.1} parent=5 // pred_region
        // Predicated region
        $region41: #{tpu_custom_call.1} parent=39 // pred_check
          %p336 = pneg %p55
        $region42: #{tpu_custom_call.1} parent=39 // pred_check_branch
          %338 = sbr.rel (%p336) target = $region44
        $region43: #{tpu_custom_call.1} parent=39 // pred_region
          %p339 = scmp.lt.s32.totalorder %s30, 1
          %s340 = scalar_select %p339, %s30, 1
          %s341 = smul.addr %s340, 32
          %s342 = smul.addr %s341, 8
          %s343 = scalar_lea.vmem %s0, %s342
        $region44: #{tpu_custom_call.1} parent=39 // pred_fallthru
          _
        // Predicated region
        $region45: #{tpu_custom_call.1} parent=39 // pred_check
          %p344 = pneg %p83
        $region46: #{tpu_custom_call.1} parent=39 // pred_check_branch
          %346 = sbr.rel (%p344) target = $region48
        $region47: #{tpu_custom_call.1} parent=39 // pred_region
          %s347 = smul.u32 16, %s31
          %p348 = scmp.lt.s32.totalorder %s30, 1
          %s349 = scalar_select %p348, %s30, 1
          %p350 = scmp.lt.s32.totalorder %s347, 31
          %s351 = scalar_select %p350, %s347, 31
          %s352 = smul.addr %s349, 32
          %s353 = sadd.s32 %s351, %s352
          %s354 = smul.addr %s353, 8
          %s355 = scalar_lea.vmem %s1, %s354
          %s356 = smul.u32 16, %s31
        $region48: #{tpu_custom_call.1} parent=39 // pred_fallthru
          _
        // Predicated region
        $region49: #{tpu_custom_call.1} parent=39 // pred_check
          %p357 = pneg %p111
        $region50: #{tpu_custom_call.1} parent=39 // pred_check_branch
          %359 = sbr.rel (%p357) target = $region52
        $region51: #{tpu_custom_call.1} parent=39 // pred_region
          %p360 = scmp.lt.s32.totalorder %s30, 1
          %s361 = scalar_select %p360, %s30, 1
          %p362 = scmp.lt.s32.totalorder %s31, 1
          %s363 = scalar_select %p362, %s31, 1
          %s364 = smul.addr %s361, 2
          %s365 = sadd.s32 %s363, %s364
          %s366 = smul.addr %s365, 4
          %s367 = scalar_lea.vmem %s2, %s366
        $region52: #{tpu_custom_call.1} parent=39 // pred_fallthru
          _
      $region40: #{tpu_custom_call.1} parent=5 // pred_fallthru
        _
      %p368 = scmp.le.s32.totalorder 1, %s23
      %p369 = scmp.lt.s32.totalorder %s23, 5
      %p370 = pnand %p368, %p369
      %p371 = pneg %p370
      // Predicated region
      $region53: #{tpu_custom_call.1} parent=5 // pred_check
        _
      $region54: #{tpu_custom_call.1} parent=5 // pred_check_branch
        %373 = sbr.rel (%p370) target = $region56
      $region55: #{tpu_custom_call.1} parent=5 // pred_region
        %s374 = ssub.s32 %s23, 1
        %p375 = scmp.lt.s32.totalorder %s32, 1
        %s376 = scalar_select %p375, %s32, 1
        %s377 = smul.addr %s376, 32
        %s378 = smul.addr %s377, 8
        %s379 = scalar_lea.vmem %s0, %s378
        %p380 = pneg %p61
        %p381 = pneg %p58
        %s382 = smul.u32 16, %s33
        %p383 = scmp.lt.s32.totalorder %s32, 1
        %s384 = scalar_select %p383, %s32, 1
        %p385 = scmp.lt.s32.totalorder %s382, 31
        %s386 = scalar_select %p385, %s382, 31
        %s387 = smul.addr %s384, 32
        %s388 = sadd.s32 %s386, %s387
        %s389 = smul.addr %s388, 8
        %s390 = scalar_lea.vmem %s1, %s389
        %p391 = pneg %p89
        %p392 = pneg %p86
        %p393 = scmp.lt.s32.totalorder %s32, 1
        %s394 = scalar_select %p393, %s32, 1
        %p395 = scmp.lt.s32.totalorder %s33, 1
        %s396 = scalar_select %p395, %s33, 1
        %s397 = smul.addr %s394, 2
        %s398 = sadd.s32 %s396, %s397
        %s399 = smul.addr %s398, 4
        %s400 = scalar_lea.vmem %s2, %s399
        %p401 = pneg %p117
        %p402 = pneg %p114
        %p403 = pneg %p138
        %p404 = pneg %p135
        %p405 = pneg %p159
        %p406 = pneg %p156
        %p407 = pneg %p180
        %p408 = pneg %p177
        %p409 = pneg %p201
        %p410 = pneg %p198
        %p411 = pneg %p222
        %p412 = pneg %p219
        %p413 = pneg %p243
        %p414 = pneg %p240
        %p415 = pneg %p271
        %p416 = pneg %p268
        %s417 = sand.u32 %s258, 1
        %s418 = scalar_lea.sflag [#allocation5], %s417
        %s419 = sand.u32 %s258, 1
        %s420 = smul.addr %s419, 4
        %s421 = scalar_lea.vmem [#allocation4], %s420
        %p422 = pneg %p299
        %p423 = pneg %p296
        %s424 = sand.u32 %s286, 1
        %s425 = scalar_lea.sflag [#allocation7], %s424
        %s426 = sand.u32 %s286, 1
        %s427 = smul.addr %s426, 256
        %s428 = scalar_lea.vmem [#allocation6], %s427
        %p429 = scmp.lt.s32.totalorder %s32, 1
        %s430 = scalar_select %p429, %s32, 1
        %s431 = smul.addr %s430, 32
        %s432 = smul.addr %s431, 8
        %s433 = scalar_lea.vmem %s0, %s432
        %s434 = smul.u32 16, %s33
        %p435 = scmp.lt.s32.totalorder %s32, 1
        %s436 = scalar_select %p435, %s32, 1
        %p437 = scmp.lt.s32.totalorder %s434, 31
        %s438 = scalar_select %p437, %s434, 31
        %s439 = smul.addr %s436, 32
        %s440 = sadd.s32 %s438, %s439
        %s441 = smul.addr %s440, 8
        %s442 = scalar_lea.vmem %s1, %s441
        %s443 = smul.u32 16, %s33
        %p444 = scmp.lt.s32.totalorder %s32, 1
        %s445 = scalar_select %p444, %s32, 1
        %p446 = scmp.lt.s32.totalorder %s33, 1
        %s447 = scalar_select %p446, %s33, 1
        %s448 = smul.addr %s445, 2
        %s449 = sadd.s32 %s447, %s448
        %s450 = smul.addr %s449, 4
        %s451 = scalar_lea.vmem %s2, %s450
        %s452 = smul.u32 16, %s33
        %p454 = scmp.eq.s32.totalorder %s33, 0
        // Predicated region
        $region57: #{tpu_custom_call.1} parent=55 // pred_check
          %p455 = pneg %p454
        $region58: #{tpu_custom_call.1} parent=55 // pred_check_branch
          %457 = sbr.rel (%p455) target = $region60
        $region59: #{tpu_custom_call.1} parent=55 // pred_region
          %v458 = vld [vmem:[%s433] sm:$0xff]
          %v459 = vld [vmem:[%s433 + $0x8] sm:$0xff]
          %v460 = vld [vmem:[%s433 + $0x10] sm:$0xff]
          %v461 = vld [vmem:[%s433 + $0x18] sm:$0xff]
          %v462 = vld [vmem:[%s433 + $0x20] sm:$0xff]
          %v463 = vld [vmem:[%s433 + $0x28] sm:$0xff]
          %v464 = vld [vmem:[%s433 + $0x30] sm:$0xff]
          %v465 = vld [vmem:[%s433 + $0x38] sm:$0xff]
          %v466 = vld [vmem:[%s433 + $0x40] sm:$0xff]
          %v467 = vld [vmem:[%s433 + $0x48] sm:$0xff]
          %v468 = vld [vmem:[%s433 + $0x50] sm:$0xff]
          %v469 = vld [vmem:[%s433 + $0x58] sm:$0xff]
          %v470 = vld [vmem:[%s433 + $0x60] sm:$0xff]
          %v471 = vld [vmem:[%s433 + $0x68] sm:$0xff]
          %v472 = vld [vmem:[%s433 + $0x70] sm:$0xff]
          %v473 = vld [vmem:[%s433 + $0x78] sm:$0xff]
          %v474 = vld [vmem:[%s433 + $0x80] sm:$0xff]
          %v475 = vld [vmem:[%s433 + $0x88] sm:$0xff]
          %v476 = vld [vmem:[%s433 + $0x90] sm:$0xff]
          %v477 = vld [vmem:[%s433 + $0x98] sm:$0xff]
          %v478 = vld [vmem:[%s433 + $0xa0] sm:$0xff]
          %v479 = vld [vmem:[%s433 + $0xa8] sm:$0xff]
          %v480 = vld [vmem:[%s433 + $0xb0] sm:$0xff]
          %v481 = vld [vmem:[%s433 + $0xb8] sm:$0xff]
          %v482 = vld [vmem:[%s433 + $0xc0] sm:$0xff]
          %v483 = vld [vmem:[%s433 + $0xc8] sm:$0xff]
          %v484 = vld [vmem:[%s433 + $0xd0] sm:$0xff]
          %v485 = vld [vmem:[%s433 + $0xd8] sm:$0xff]
          %v486 = vld [vmem:[%s433 + $0xe0] sm:$0xff]
          %v487 = vld [vmem:[%s433 + $0xe8] sm:$0xff]
          %v488 = vld [vmem:[%s433 + $0xf0] sm:$0xff]
          %v489 = vld [vmem:[%s433 + $0xf8] sm:$0xff]
          %v490 = vpack.c.bf16 %v459, %v458
          %v491 = vpack.c.bf16 %v461, %v460
          %v492 = vpack.c.bf16 %v463, %v462
          %v493 = vpack.c.bf16 %v465, %v464
          %v494 = vpack.c.bf16 %v467, %v466
          %v495 = vpack.c.bf16 %v469, %v468
          %v496 = vpack.c.bf16 %v471, %v470
          %v497 = vpack.c.bf16 %v473, %v472
          %v498 = vpack.c.bf16 %v475, %v474
          %v499 = vpack.c.bf16 %v477, %v476
          %v500 = vpack.c.bf16 %v479, %v478
          %v501 = vpack.c.bf16 %v481, %v480
          %v502 = vpack.c.bf16 %v483, %v482
          %v503 = vpack.c.bf16 %v485, %v484
          %v504 = vpack.c.bf16 %v487, %v486
          %v505 = vpack.c.bf16 %v489, %v488
          %v506 = vld [vmem:[%s5] sm:$0x3]
          %v507 = vld [vmem:[%s6] sm:$0x1]
          %v509 = vperm.slane %v507, 0
          %vm511 = vcmask 31744
          %v513 = vsel %vm511, %v490, 0
          %v516 = vsel %vm511, %v491, 0
          %v519 = vsel %vm511, %v492, 0
          %v522 = vsel %vm511, %v493, 0
          %v525 = vsel %vm511, %v494, 0
          %v528 = vsel %vm511, %v495, 0
          %v531 = vsel %vm511, %v496, 0
          %v534 = vsel %vm511, %v497, 0
          %v537 = vsel %vm511, %v498, 0
          %v540 = vsel %vm511, %v499, 0
          %v543 = vsel %vm511, %v500, 0
          %v546 = vsel %vm511, %v501, 0
          %v549 = vsel %vm511, %v502, 0
          %v552 = vsel %vm511, %v503, 0
          %v555 = vsel %vm511, %v504, 0
          %v558 = vsel %vm511, %v505, 0
          %vm560 = vcmask 1041408
          %v562 = vsel %vm560, %v506, 0
          %564 = vmatpush.bf16.msra.mxu0 0
          %565 = vmatpush.bf16.msra.mxu0 0
          %566 = vmatpush.bf16.msra.mxu0 0
          %567 = vmatpush.bf16.msra.mxu0 0
          %568 = vmatpush.bf16.msra.mxu0 0
          %569 = vmatpush.bf16.msra.mxu0 0
          %570 = vmatpush.bf16.msra.mxu0 0
          %571 = vmatpush.bf16.msra.mxu0 %v562
          %572 = vmatmul.bf16.gmra.mxu0 %v513
          %v573 = vpop.f32.mrf.mxu0
          %v574 = vadd.f32 %v509, %v573
          %v575 = vpop.f32.mrf.mxu0
          %v576 = vadd.f32 %v509, %v575
          %577 = vmatmul.bf16.gmra.mxu0 %v516
          %v578 = vpop.f32.mrf.mxu0
          %v579 = vadd.f32 %v509, %v578
          %v580 = vpop.f32.mrf.mxu0
          %v581 = vadd.f32 %v509, %v580
          %582 = vmatmul.bf16.gmra.mxu0 %v519
          %v583 = vpop.f32.mrf.mxu0
          %v584 = vadd.f32 %v509, %v583
          %v585 = vpop.f32.mrf.mxu0
          %v586 = vadd.f32 %v509, %v585
          %587 = vmatmul.bf16.gmra.mxu0 %v522
          %v588 = vpop.f32.mrf.mxu0
          %v589 = vadd.f32 %v509, %v588
          %v590 = vpop.f32.mrf.mxu0
          %v591 = vadd.f32 %v509, %v590
          %592 = vmatmul.bf16.gmra.mxu0 %v525
          %v593 = vpop.f32.mrf.mxu0
          %v594 = vadd.f32 %v509, %v593
          %v595 = vpop.f32.mrf.mxu0
          %v596 = vadd.f32 %v509, %v595
          %597 = vmatmul.bf16.gmra.mxu0 %v528
          %v598 = vpop.f32.mrf.mxu0
          %v599 = vadd.f32 %v509, %v598
          %v600 = vpop.f32.mrf.mxu0
          %v601 = vadd.f32 %v509, %v600
          %602 = vmatmul.bf16.gmra.mxu0 %v531
          %v603 = vpop.f32.mrf.mxu0
          %v604 = vadd.f32 %v509, %v603
          %v605 = vpop.f32.mrf.mxu0
          %v606 = vadd.f32 %v509, %v605
          %607 = vmatmul.bf16.gmra.mxu0 %v534
          %v608 = vpop.f32.mrf.mxu0
          %v609 = vadd.f32 %v509, %v608
          %v610 = vpop.f32.mrf.mxu0
          %v611 = vadd.f32 %v509, %v610
          %612 = vmatmul.bf16.gmra.mxu0 %v537
          %v613 = vpop.f32.mrf.mxu0
          %v614 = vadd.f32 %v509, %v613
          %v615 = vpop.f32.mrf.mxu0
          %v616 = vadd.f32 %v509, %v615
          %617 = vmatmul.bf16.gmra.mxu0 %v540
          %v618 = vpop.f32.mrf.mxu0
          %v619 = vadd.f32 %v509, %v618
          %v620 = vpop.f32.mrf.mxu0
          %v621 = vadd.f32 %v509, %v620
          %622 = vmatmul.bf16.gmra.mxu0 %v543
          %v623 = vpop.f32.mrf.mxu0
          %v624 = vadd.f32 %v509, %v623
          %v625 = vpop.f32.mrf.mxu0
          %v626 = vadd.f32 %v509, %v625
          %627 = vmatmul.bf16.gmra.mxu0 %v546
          %v628 = vpop.f32.mrf.mxu0
          %v629 = vadd.f32 %v509, %v628
          %v630 = vpop.f32.mrf.mxu0
          %v631 = vadd.f32 %v509, %v630
          %632 = vmatmul.bf16.gmra.mxu0 %v549
          %v633 = vpop.f32.mrf.mxu0
          %v634 = vadd.f32 %v509, %v633
          %v635 = vpop.f32.mrf.mxu0
          %v636 = vadd.f32 %v509, %v635
          %637 = vmatmul.bf16.gmra.mxu0 %v552
          %v638 = vpop.f32.mrf.mxu0
          %v639 = vadd.f32 %v509, %v638
          %v640 = vpop.f32.mrf.mxu0
          %v641 = vadd.f32 %v509, %v640
          %642 = vmatmul.bf16.gmra.mxu0 %v555
          %v643 = vpop.f32.mrf.mxu0
          %v644 = vadd.f32 %v509, %v643
          %v645 = vpop.f32.mrf.mxu0
          %v646 = vadd.f32 %v509, %v645
          %647 = vmatmul.bf16.gmra.mxu0 %v558
          %v648 = vpop.f32.mrf.mxu0
          %v649 = vadd.f32 %v509, %v648
          %v650 = vpop.f32.mrf.mxu0
          %v651 = vadd.f32 %v509, %v650
          %652 = vdwg.mxu0
          %v653 = vpack.c.bf16 %v574, %v574
          %v654 = vpack.c.bf16 %v576, %v576
          %v655 = vpack.c.bf16 %v579, %v579
          %v656 = vpack.c.bf16 %v581, %v581
          %v657 = vpack.c.bf16 %v584, %v584
          %v658 = vpack.c.bf16 %v586, %v586
          %v659 = vpack.c.bf16 %v589, %v589
          %v660 = vpack.c.bf16 %v591, %v591
          %v661 = vpack.c.bf16 %v594, %v594
          %v662 = vpack.c.bf16 %v596, %v596
          %v663 = vpack.c.bf16 %v599, %v599
          %v664 = vpack.c.bf16 %v601, %v601
          %v665 = vpack.c.bf16 %v604, %v604
          %v666 = vpack.c.bf16 %v606, %v606
          %v667 = vpack.c.bf16 %v609, %v609
          %v668 = vpack.c.bf16 %v611, %v611
          %v669 = vpack.c.bf16 %v614, %v614
          %v670 = vpack.c.bf16 %v616, %v616
          %v671 = vpack.c.bf16 %v619, %v619
          %v672 = vpack.c.bf16 %v621, %v621
          %v673 = vpack.c.bf16 %v624, %v624
          %v674 = vpack.c.bf16 %v626, %v626
          %v675 = vpack.c.bf16 %v629, %v629
          %v676 = vpack.c.bf16 %v631, %v631
          %v677 = vpack.c.bf16 %v634, %v634
          %v678 = vpack.c.bf16 %v636, %v636
          %v679 = vpack.c.bf16 %v639, %v639
          %v680 = vpack.c.bf16 %v641, %v641
          %v681 = vpack.c.bf16 %v644, %v644
          %v682 = vpack.c.bf16 %v646, %v646
          %v683 = vpack.c.bf16 %v649, %v649
          %v684 = vpack.c.bf16 %v651, %v651
          %vm685 = vcmask 11264
          %686 = vst.msk [vmem:[#allocation2] sm:$0xf] %vm685, %v653
          %687 = vst.msk [vmem:[#allocation2 + $0x4] sm:$0xf] %vm685, %v654
          %688 = vst.msk [vmem:[#allocation2 + $0x8] sm:$0xf] %vm685, %v655
          %689 = vst.msk [vmem:[#allocation2 + $0xc] sm:$0xf] %vm685, %v656
          %690 = vst.msk [vmem:[#allocation2 + $0x10] sm:$0xf] %vm685, %v657
          %691 = vst.msk [vmem:[#allocation2 + $0x14] sm:$0xf] %vm685, %v658
          %692 = vst.msk [vmem:[#allocation2 + $0x18] sm:$0xf] %vm685, %v659
          %693 = vst.msk [vmem:[#allocation2 + $0x1c] sm:$0xf] %vm685, %v660
          %694 = vst.msk [vmem:[#allocation2 + $0x20] sm:$0xf] %vm685, %v661
          %695 = vst.msk [vmem:[#allocation2 + $0x24] sm:$0xf] %vm685, %v662
          %696 = vst.msk [vmem:[#allocation2 + $0x28] sm:$0xf] %vm685, %v663
          %697 = vst.msk [vmem:[#allocation2 + $0x2c] sm:$0xf] %vm685, %v664
          %698 = vst.msk [vmem:[#allocation2 + $0x30] sm:$0xf] %vm685, %v665
          %699 = vst.msk [vmem:[#allocation2 + $0x34] sm:$0xf] %vm685, %v666
          %700 = vst.msk [vmem:[#allocation2 + $0x38] sm:$0xf] %vm685, %v667
          %701 = vst.msk [vmem:[#allocation2 + $0x3c] sm:$0xf] %vm685, %v668
          %702 = vst.msk [vmem:[#allocation2 + $0x40] sm:$0xf] %vm685, %v669
          %703 = vst.msk [vmem:[#allocation2 + $0x44] sm:$0xf] %vm685, %v670
          %704 = vst.msk [vmem:[#allocation2 + $0x48] sm:$0xf] %vm685, %v671
          %705 = vst.msk [vmem:[#allocation2 + $0x4c] sm:$0xf] %vm685, %v672
          %706 = vst.msk [vmem:[#allocation2 + $0x50] sm:$0xf] %vm685, %v673
          %707 = vst.msk [vmem:[#allocation2 + $0x54] sm:$0xf] %vm685, %v674
          %708 = vst.msk [vmem:[#allocation2 + $0x58] sm:$0xf] %vm685, %v675
          %709 = vst.msk [vmem:[#allocation2 + $0x5c] sm:$0xf] %vm685, %v676
          %710 = vst.msk [vmem:[#allocation2 + $0x60] sm:$0xf] %vm685, %v677
          %711 = vst.msk [vmem:[#allocation2 + $0x64] sm:$0xf] %vm685, %v678
          %712 = vst.msk [vmem:[#allocation2 + $0x68] sm:$0xf] %vm685, %v679
          %713 = vst.msk [vmem:[#allocation2 + $0x6c] sm:$0xf] %vm685, %v680
          %714 = vst.msk [vmem:[#allocation2 + $0x70] sm:$0xf] %vm685, %v681
          %715 = vst.msk [vmem:[#allocation2 + $0x74] sm:$0xf] %vm685, %v682
          %716 = vst.msk [vmem:[#allocation2 + $0x78] sm:$0xf] %vm685, %v683
          %717 = vst.msk [vmem:[#allocation2 + $0x7c] sm:$0xf] %vm685, %v684
          %750 = vrot.lane.b32.xlu0 %v653, 126
          %v751 = vpop.permute.xlu0 %750
          %752 = vrot.lane.b32.xlu0 %v654, 126
          %v753 = vpop.permute.xlu0 %752
          %754 = vrot.lane.b32.xlu0 %v655, 126
          %v755 = vpop.permute.xlu0 %754
          %756 = vrot.lane.b32.xlu0 %v656, 126
          %v757 = vpop.permute.xlu0 %756
          %758 = vrot.lane.b32.xlu0 %v657, 126
          %v759 = vpop.permute.xlu0 %758
          %760 = vrot.lane.b32.xlu0 %v658, 126
          %v761 = vpop.permute.xlu0 %760
          %762 = vrot.lane.b32.xlu0 %v659, 126
          %v763 = vpop.permute.xlu0 %762
          %764 = vrot.lane.b32.xlu0 %v660, 126
          %v765 = vpop.permute.xlu0 %764
          %766 = vrot.lane.b32.xlu0 %v661, 126
          %v767 = vpop.permute.xlu0 %766
          %768 = vrot.lane.b32.xlu0 %v662, 126
          %v769 = vpop.permute.xlu0 %768
          %770 = vrot.lane.b32.xlu0 %v663, 126
          %v771 = vpop.permute.xlu0 %770
          %772 = vrot.lane.b32.xlu0 %v664, 126
          %v773 = vpop.permute.xlu0 %772
          %774 = vrot.lane.b32.xlu0 %v665, 126
          %v775 = vpop.permute.xlu0 %774
          %776 = vrot.lane.b32.xlu0 %v666, 126
          %v777 = vpop.permute.xlu0 %776
          %778 = vrot.lane.b32.xlu0 %v667, 126
          %v779 = vpop.permute.xlu0 %778
          %780 = vrot.lane.b32.xlu0 %v668, 126
          %v781 = vpop.permute.xlu0 %780
          %782 = vrot.lane.b32.xlu0 %v669, 126
          %v783 = vpop.permute.xlu0 %782
          %784 = vrot.lane.b32.xlu0 %v670, 126
          %v785 = vpop.permute.xlu0 %784
          %786 = vrot.lane.b32.xlu0 %v671, 126
          %v787 = vpop.permute.xlu0 %786
          %788 = vrot.lane.b32.xlu0 %v672, 126
          %v789 = vpop.permute.xlu0 %788
          %790 = vrot.lane.b32.xlu0 %v673, 126
          %v791 = vpop.permute.xlu0 %790
          %792 = vrot.lane.b32.xlu0 %v674, 126
          %v793 = vpop.permute.xlu0 %792
          %794 = vrot.lane.b32.xlu0 %v675, 126
          %v795 = vpop.permute.xlu0 %794
          %796 = vrot.lane.b32.xlu0 %v676, 126
          %v797 = vpop.permute.xlu0 %796
          %798 = vrot.lane.b32.xlu0 %v677, 126
          %v799 = vpop.permute.xlu0 %798
          %800 = vrot.lane.b32.xlu0 %v678, 126
          %v801 = vpop.permute.xlu0 %800
          %802 = vrot.lane.b32.xlu0 %v679, 126
          %v803 = vpop.permute.xlu0 %802
          %804 = vrot.lane.b32.xlu0 %v680, 126
          %v805 = vpop.permute.xlu0 %804
          %806 = vrot.lane.b32.xlu0 %v681, 126
          %v807 = vpop.permute.xlu0 %806
          %808 = vrot.lane.b32.xlu0 %v682, 126
          %v809 = vpop.permute.xlu0 %808
          %810 = vrot.lane.b32.xlu0 %v683, 126
          %v811 = vpop.permute.xlu0 %810
          %812 = vrot.lane.b32.xlu0 %v684, 126
          %v813 = vpop.permute.xlu0 %812
          %846 = vst.msk [vmem:[#allocation3] sm:$0xf] %vm685, %v751
          %847 = vst.msk [vmem:[#allocation3 + $0x4] sm:$0xf] %vm685, %v753
          %848 = vst.msk [vmem:[#allocation3 + $0x8] sm:$0xf] %vm685, %v755
          %849 = vst.msk [vmem:[#allocation3 + $0xc] sm:$0xf] %vm685, %v757
          %850 = vst.msk [vmem:[#allocation3 + $0x10] sm:$0xf] %vm685, %v759
          %851 = vst.msk [vmem:[#allocation3 + $0x14] sm:$0xf] %vm685, %v761
          %852 = vst.msk [vmem:[#allocation3 + $0x18] sm:$0xf] %vm685, %v763
          %853 = vst.msk [vmem:[#allocation3 + $0x1c] sm:$0xf] %vm685, %v765
          %854 = vst.msk [vmem:[#allocation3 + $0x20] sm:$0xf] %vm685, %v767
          %855 = vst.msk [vmem:[#allocation3 + $0x24] sm:$0xf] %vm685, %v769
          %856 = vst.msk [vmem:[#allocation3 + $0x28] sm:$0xf] %vm685, %v771
          %857 = vst.msk [vmem:[#allocation3 + $0x2c] sm:$0xf] %vm685, %v773
          %858 = vst.msk [vmem:[#allocation3 + $0x30] sm:$0xf] %vm685, %v775
          %859 = vst.msk [vmem:[#allocation3 + $0x34] sm:$0xf] %vm685, %v777
          %860 = vst.msk [vmem:[#allocation3 + $0x38] sm:$0xf] %vm685, %v779
          %861 = vst.msk [vmem:[#allocation3 + $0x3c] sm:$0xf] %vm685, %v781
          %862 = vst.msk [vmem:[#allocation3 + $0x40] sm:$0xf] %vm685, %v783
          %863 = vst.msk [vmem:[#allocation3 + $0x44] sm:$0xf] %vm685, %v785
          %864 = vst.msk [vmem:[#allocation3 + $0x48] sm:$0xf] %vm685, %v787
          %865 = vst.msk [vmem:[#allocation3 + $0x4c] sm:$0xf] %vm685, %v789
          %866 = vst.msk [vmem:[#allocation3 + $0x50] sm:$0xf] %vm685, %v791
          %867 = vst.msk [vmem:[#allocation3 + $0x54] sm:$0xf] %vm685, %v793
          %868 = vst.msk [vmem:[#allocation3 + $0x58] sm:$0xf] %vm685, %v795
          %869 = vst.msk [vmem:[#allocation3 + $0x5c] sm:$0xf] %vm685, %v797
          %870 = vst.msk [vmem:[#allocation3 + $0x60] sm:$0xf] %vm685, %v799
          %871 = vst.msk [vmem:[#allocation3 + $0x64] sm:$0xf] %vm685, %v801
          %872 = vst.msk [vmem:[#allocation3 + $0x68] sm:$0xf] %vm685, %v803
          %873 = vst.msk [vmem:[#allocation3 + $0x6c] sm:$0xf] %vm685, %v805
          %874 = vst.msk [vmem:[#allocation3 + $0x70] sm:$0xf] %vm685, %v807
          %875 = vst.msk [vmem:[#allocation3 + $0x74] sm:$0xf] %vm685, %v809
          %876 = vst.msk [vmem:[#allocation3 + $0x78] sm:$0xf] %vm685, %v811
          %877 = vst.msk [vmem:[#allocation3 + $0x7c] sm:$0xf] %vm685, %v813
        $region60: #{tpu_custom_call.1} parent=55 // pred_fallthru
          _
        %v878 = vld [vmem:[%s442] sm:$0xff]
        %v879 = vld [vmem:[%s442 + $0x8] sm:$0xff]
        %v880 = vld [vmem:[%s442 + $0x10] sm:$0xff]
        %v881 = vld [vmem:[%s442 + $0x18] sm:$0xff]
        %v882 = vld [vmem:[%s442 + $0x20] sm:$0xff]
        %v883 = vld [vmem:[%s442 + $0x28] sm:$0xff]
        %v884 = vld [vmem:[%s442 + $0x30] sm:$0xff]
        %v885 = vld [vmem:[%s442 + $0x38] sm:$0xff]
        %v886 = vld [vmem:[%s442 + $0x40] sm:$0xff]
        %v887 = vld [vmem:[%s442 + $0x48] sm:$0xff]
        %v888 = vld [vmem:[%s442 + $0x50] sm:$0xff]
        %v889 = vld [vmem:[%s442 + $0x58] sm:$0xff]
        %v890 = vld [vmem:[%s442 + $0x60] sm:$0xff]
        %v891 = vld [vmem:[%s442 + $0x68] sm:$0xff]
        %v892 = vld [vmem:[%s442 + $0x70] sm:$0xff]
        %v893 = vld [vmem:[%s442 + $0x78] sm:$0xff]
        %v894 = vpack.c.bf16 %v879, %v878
        %v895 = vpack.c.bf16 %v881, %v880
        %v896 = vpack.c.bf16 %v883, %v882
        %v897 = vpack.c.bf16 %v885, %v884
        %v898 = vpack.c.bf16 %v887, %v886
        %v899 = vpack.c.bf16 %v889, %v888
        %v900 = vpack.c.bf16 %v891, %v890
        %v901 = vpack.c.bf16 %v893, %v892
        %v902 = vld [vmem:[%s3] sm:$0x3]
        %v903 = vld [vmem:[%s4] sm:$0x1]
        %v905 = vperm.slane %v903, 0
        %vm907 = vcmask 31744
        %v909 = vsel %vm907, %v894, 0
        %v912 = vsel %vm907, %v895, 0
        %v915 = vsel %vm907, %v896, 0
        %v918 = vsel %vm907, %v897, 0
        %v921 = vsel %vm907, %v898, 0
        %v924 = vsel %vm907, %v899, 0
        %v927 = vsel %vm907, %v900, 0
        %v930 = vsel %vm907, %v901, 0
        %vm932 = vcmask 1041408
        %v934 = vsel %vm932, %v902, 0
        %936 = vmatpush.bf16.msra.mxu0 0
        %937 = vmatpush.bf16.msra.mxu0 0
        %938 = vmatpush.bf16.msra.mxu0 0
        %939 = vmatpush.bf16.msra.mxu0 0
        %940 = vmatpush.bf16.msra.mxu0 0
        %941 = vmatpush.bf16.msra.mxu0 0
        %942 = vmatpush.bf16.msra.mxu0 0
        %943 = vmatpush.bf16.msra.mxu0 %v934
        %944 = vmatmul.bf16.gmra.mxu0 %v909
        %v945 = vpop.f32.mrf.mxu0
        %v946 = vadd.f32 %v905, %v945
        %v947 = vpop.f32.mrf.mxu0
        %v948 = vadd.f32 %v905, %v947
        %949 = vmatmul.bf16.gmra.mxu0 %v912
        %v950 = vpop.f32.mrf.mxu0
        %v951 = vadd.f32 %v905, %v950
        %v952 = vpop.f32.mrf.mxu0
        %v953 = vadd.f32 %v905, %v952
        %954 = vmatmul.bf16.gmra.mxu0 %v915
        %v955 = vpop.f32.mrf.mxu0
        %v956 = vadd.f32 %v905, %v955
        %v957 = vpop.f32.mrf.mxu0
        %v958 = vadd.f32 %v905, %v957
        %959 = vmatmul.bf16.gmra.mxu0 %v918
        %v960 = vpop.f32.mrf.mxu0
        %v961 = vadd.f32 %v905, %v960
        %v962 = vpop.f32.mrf.mxu0
        %v963 = vadd.f32 %v905, %v962
        %964 = vmatmul.bf16.gmra.mxu0 %v921
        %v965 = vpop.f32.mrf.mxu0
        %v966 = vadd.f32 %v905, %v965
        %v967 = vpop.f32.mrf.mxu0
        %v968 = vadd.f32 %v905, %v967
        %969 = vmatmul.bf16.gmra.mxu0 %v924
        %v970 = vpop.f32.mrf.mxu0
        %v971 = vadd.f32 %v905, %v970
        %v972 = vpop.f32.mrf.mxu0
        %v973 = vadd.f32 %v905, %v972
        %974 = vmatmul.bf16.gmra.mxu0 %v927
        %v975 = vpop.f32.mrf.mxu0
        %v976 = vadd.f32 %v905, %v975
        %v977 = vpop.f32.mrf.mxu0
        %v978 = vadd.f32 %v905, %v977
        %979 = vmatmul.bf16.gmra.mxu0 %v930
        %v980 = vpop.f32.mrf.mxu0
        %v981 = vadd.f32 %v905, %v980
        %v982 = vpop.f32.mrf.mxu0
        %v983 = vadd.f32 %v905, %v982
        %984 = vdwg.mxu0
        %v985 = vpack.c.bf16 %v948, %v946
        %v986 = vpack.c.bf16 %v953, %v951
        %v987 = vpack.c.bf16 %v958, %v956
        %v988 = vpack.c.bf16 %v963, %v961
        %v989 = vpack.c.bf16 %v968, %v966
        %v990 = vpack.c.bf16 %v973, %v971
        %v991 = vpack.c.bf16 %v978, %v976
        %v992 = vpack.c.bf16 %v983, %v981
        %v993 = vld [vmem:[#allocation2] sm:$0xf]
        %v994 = vld [vmem:[#allocation2 + $0x4] sm:$0xf]
        %v995 = vld [vmem:[#allocation2 + $0x8] sm:$0xf]
        %v996 = vld [vmem:[#allocation2 + $0xc] sm:$0xf]
        %v997 = vld [vmem:[#allocation2 + $0x10] sm:$0xf]
        %v998 = vld [vmem:[#allocation2 + $0x14] sm:$0xf]
        %v999 = vld [vmem:[#allocation2 + $0x18] sm:$0xf]
        %v1000 = vld [vmem:[#allocation2 + $0x1c] sm:$0xf]
        %v1001 = vld [vmem:[#allocation2 + $0x20] sm:$0xf]
        %v1002 = vld [vmem:[#allocation2 + $0x24] sm:$0xf]
        %v1003 = vld [vmem:[#allocation2 + $0x28] sm:$0xf]
        %v1004 = vld [vmem:[#allocation2 + $0x2c] sm:$0xf]
        %v1005 = vld [vmem:[#allocation2 + $0x30] sm:$0xf]
        %v1006 = vld [vmem:[#allocation2 + $0x34] sm:$0xf]
        %v1007 = vld [vmem:[#allocation2 + $0x38] sm:$0xf]
        %v1008 = vld [vmem:[#allocation2 + $0x3c] sm:$0xf]
        %v1009 = vld [vmem:[#allocation2 + $0x40] sm:$0xf]
        %v1010 = vld [vmem:[#allocation2 + $0x44] sm:$0xf]
        %v1011 = vld [vmem:[#allocation2 + $0x48] sm:$0xf]
        %v1012 = vld [vmem:[#allocation2 + $0x4c] sm:$0xf]
        %v1013 = vld [vmem:[#allocation2 + $0x50] sm:$0xf]
        %v1014 = vld [vmem:[#allocation2 + $0x54] sm:$0xf]
        %v1015 = vld [vmem:[#allocation2 + $0x58] sm:$0xf]
        %v1016 = vld [vmem:[#allocation2 + $0x5c] sm:$0xf]
        %v1017 = vld [vmem:[#allocation2 + $0x60] sm:$0xf]
        %v1018 = vld [vmem:[#allocation2 + $0x64] sm:$0xf]
        %v1019 = vld [vmem:[#allocation2 + $0x68] sm:$0xf]
        %v1020 = vld [vmem:[#allocation2 + $0x6c] sm:$0xf]
        %v1021 = vld [vmem:[#allocation2 + $0x70] sm:$0xf]
        %v1022 = vld [vmem:[#allocation2 + $0x74] sm:$0xf]
        %v1023 = vld [vmem:[#allocation2 + $0x78] sm:$0xf]
        %v1024 = vld [vmem:[#allocation2 + $0x7c] sm:$0xf]
        %v1057 = vunpack.c.l.b16 %v993
        %v1058 = vunpack.c.l.b16 %v994
        %v1059 = vunpack.c.l.b16 %v995
        %v1060 = vunpack.c.l.b16 %v996
        %v1061 = vunpack.c.l.b16 %v997
        %v1062 = vunpack.c.l.b16 %v998
        %v1063 = vunpack.c.l.b16 %v999
        %v1064 = vunpack.c.l.b16 %v1000
        %v1065 = vunpack.c.l.b16 %v1001
        %v1066 = vunpack.c.l.b16 %v1002
        %v1067 = vunpack.c.l.b16 %v1003
        %v1068 = vunpack.c.l.b16 %v1004
        %v1069 = vunpack.c.l.b16 %v1005
        %v1070 = vunpack.c.l.b16 %v1006
        %v1071 = vunpack.c.l.b16 %v1007
        %v1072 = vunpack.c.l.b16 %v1008
        %v1073 = vunpack.c.l.b16 %v1009
        %v1074 = vunpack.c.l.b16 %v1010
        %v1075 = vunpack.c.l.b16 %v1011
        %v1076 = vunpack.c.l.b16 %v1012
        %v1077 = vunpack.c.l.b16 %v1013
        %v1078 = vunpack.c.l.b16 %v1014
        %v1079 = vunpack.c.l.b16 %v1015
        %v1080 = vunpack.c.l.b16 %v1016
        %v1081 = vunpack.c.l.b16 %v1017
        %v1082 = vunpack.c.l.b16 %v1018
        %v1083 = vunpack.c.l.b16 %v1019
        %v1084 = vunpack.c.l.b16 %v1020
        %v1085 = vunpack.c.l.b16 %v1021
        %v1086 = vunpack.c.l.b16 %v1022
        %v1087 = vunpack.c.l.b16 %v1023
        %v1088 = vunpack.c.l.b16 %v1024
        %v1089 = vpack.c.b16 %v1058, %v1057
        %v1090 = vpack.c.b16 %v1060, %v1059
        %v1091 = vpack.c.b16 %v1062, %v1061
        %v1092 = vpack.c.b16 %v1064, %v1063
        %v1093 = vpack.c.b16 %v1066, %v1065
        %v1094 = vpack.c.b16 %v1068, %v1067
        %v1095 = vpack.c.b16 %v1070, %v1069
        %v1096 = vpack.c.b16 %v1072, %v1071
        %v1097 = vpack.c.b16 %v1074, %v1073
        %v1098 = vpack.c.b16 %v1076, %v1075
        %v1099 = vpack.c.b16 %v1078, %v1077
        %v1100 = vpack.c.b16 %v1080, %v1079
        %v1101 = vpack.c.b16 %v1082, %v1081
        %v1102 = vpack.c.b16 %v1084, %v1083
        %v1103 = vpack.c.b16 %v1086, %v1085
        %v1104 = vpack.c.b16 %v1088, %v1087
        %vm1105 = vcmask 15360
        %v1107 = vsel %vm1105, %v985, 0
        %v1110 = vsel %vm1105, %v986, 0
        %v1113 = vsel %vm1105, %v987, 0
        %v1116 = vsel %vm1105, %v988, 0
        %v1119 = vsel %vm1105, %v989, 0
        %v1122 = vsel %vm1105, %v990, 0
        %v1125 = vsel %vm1105, %v991, 0
        %v1128 = vsel %vm1105, %v992, 0
        %v1131 = vsel %vm1105, %v1089, 0
        %v1134 = vsel %vm1105, %v1090, 0
        %v1137 = vsel %vm1105, %v1091, 0
        %v1140 = vsel %vm1105, %v1092, 0
        %v1143 = vsel %vm1105, %v1093, 0
        %v1146 = vsel %vm1105, %v1094, 0
        %v1149 = vsel %vm1105, %v1095, 0
        %v1152 = vsel %vm1105, %v1096, 0
        %v1155 = vsel %vm1105, %v1097, 0
        %v1158 = vsel %vm1105, %v1098, 0
        %v1161 = vsel %vm1105, %v1099, 0
        %v1164 = vsel %vm1105, %v1100, 0
        %v1167 = vsel %vm1105, %v1101, 0
        %v1170 = vsel %vm1105, %v1102, 0
        %v1173 = vsel %vm1105, %v1103, 0
        %v1176 = vsel %vm1105, %v1104, 0
        %1178 = vmatpush.bf16.xpose.msra.mxu0 %v1152
        %1179 = vmatpush.bf16.xpose.msra.mxu0 %v1149
        %1180 = vmatpush.bf16.xpose.msra.mxu0 %v1146
        %1181 = vmatpush.bf16.xpose.msra.mxu0 %v1143
        %1182 = vmatpush.bf16.xpose.msra.mxu0 %v1140
        %1183 = vmatpush.bf16.xpose.msra.mxu0 %v1137
        %1184 = vmatpush.bf16.xpose.msra.mxu0 %v1134
        %1185 = vmatpush.bf16.xpose.msra.mxu0 %v1131
        %1186 = vmatmul.bf16.gmra.mxu0 %v1107
        %v1187 = vpop.f32.mrf.mxu0
        %v1188 = vadd.f32 0.0, %v1187
        %v1189 = vpop.f32.mrf.mxu0
        %v1190 = vadd.f32 0.0, %v1189
        %1191 = vmatmul.bf16.gmra.mxu0 %v1110
        %v1192 = vpop.f32.mrf.mxu0
        %v1193 = vadd.f32 0.0, %v1192
        %v1194 = vpop.f32.mrf.mxu0
        %v1195 = vadd.f32 0.0, %v1194
        %1196 = vmatmul.bf16.gmra.mxu0 %v1113
        %v1197 = vpop.f32.mrf.mxu0
        %v1198 = vadd.f32 0.0, %v1197
        %v1199 = vpop.f32.mrf.mxu0
        %v1200 = vadd.f32 0.0, %v1199
        %1201 = vmatmul.bf16.gmra.mxu0 %v1116
        %v1202 = vpop.f32.mrf.mxu0
        %v1203 = vadd.f32 0.0, %v1202
        %v1204 = vpop.f32.mrf.mxu0
        %v1205 = vadd.f32 0.0, %v1204
        %1206 = vmatmul.bf16.gmra.mxu0 %v1119
        %v1207 = vpop.f32.mrf.mxu0
        %v1208 = vadd.f32 0.0, %v1207
        %v1209 = vpop.f32.mrf.mxu0
        %v1210 = vadd.f32 0.0, %v1209
        %1211 = vmatmul.bf16.gmra.mxu0 %v1122
        %v1212 = vpop.f32.mrf.mxu0
        %v1213 = vadd.f32 0.0, %v1212
        %v1214 = vpop.f32.mrf.mxu0
        %v1215 = vadd.f32 0.0, %v1214
        %1216 = vmatmul.bf16.gmra.mxu0 %v1125
        %v1217 = vpop.f32.mrf.mxu0
        %v1218 = vadd.f32 0.0, %v1217
        %v1219 = vpop.f32.mrf.mxu0
        %v1220 = vadd.f32 0.0, %v1219
        %1221 = vmatmul.bf16.gmra.mxu0 %v1128
        %v1222 = vpop.f32.mrf.mxu0
        %v1223 = vadd.f32 0.0, %v1222
        %v1224 = vpop.f32.mrf.mxu0
        %v1225 = vadd.f32 0.0, %v1224
        %1226 = vdwg.mxu0
        %1227 = vmatpush.bf16.xpose.msra.mxu0 %v1176
        %1228 = vmatpush.bf16.xpose.msra.mxu0 %v1173
        %1229 = vmatpush.bf16.xpose.msra.mxu0 %v1170
        %1230 = vmatpush.bf16.xpose.msra.mxu0 %v1167
        %1231 = vmatpush.bf16.xpose.msra.mxu0 %v1164
        %1232 = vmatpush.bf16.xpose.msra.mxu0 %v1161
        %1233 = vmatpush.bf16.xpose.msra.mxu0 %v1158
        %1234 = vmatpush.bf16.xpose.msra.mxu0 %v1155
        %1235 = vmatmul.bf16.gmra.mxu0 %v1107
        %v1236 = vpop.f32.mrf.mxu0
        %v1237 = vadd.f32 0.0, %v1236
        %v1238 = vpop.f32.mrf.mxu0
        %v1239 = vadd.f32 0.0, %v1238
        %1240 = vmatmul.bf16.gmra.mxu0 %v1110
        %v1241 = vpop.f32.mrf.mxu0
        %v1242 = vadd.f32 0.0, %v1241
        %v1243 = vpop.f32.mrf.mxu0
        %v1244 = vadd.f32 0.0, %v1243
        %1245 = vmatmul.bf16.gmra.mxu0 %v1113
        %v1246 = vpop.f32.mrf.mxu0
        %v1247 = vadd.f32 0.0, %v1246
        %v1248 = vpop.f32.mrf.mxu0
        %v1249 = vadd.f32 0.0, %v1248
        %1250 = vmatmul.bf16.gmra.mxu0 %v1116
        %v1251 = vpop.f32.mrf.mxu0
        %v1252 = vadd.f32 0.0, %v1251
        %v1253 = vpop.f32.mrf.mxu0
        %v1254 = vadd.f32 0.0, %v1253
        %1255 = vmatmul.bf16.gmra.mxu0 %v1119
        %v1256 = vpop.f32.mrf.mxu0
        %v1257 = vadd.f32 0.0, %v1256
        %v1258 = vpop.f32.mrf.mxu0
        %v1259 = vadd.f32 0.0, %v1258
        %1260 = vmatmul.bf16.gmra.mxu0 %v1122
        %v1261 = vpop.f32.mrf.mxu0
        %v1262 = vadd.f32 0.0, %v1261
        %v1263 = vpop.f32.mrf.mxu0
        %v1264 = vadd.f32 0.0, %v1263
        %1265 = vmatmul.bf16.gmra.mxu0 %v1125
        %v1266 = vpop.f32.mrf.mxu0
        %v1267 = vadd.f32 0.0, %v1266
        %v1268 = vpop.f32.mrf.mxu0
        %v1269 = vadd.f32 0.0, %v1268
        %1270 = vmatmul.bf16.gmra.mxu0 %v1128
        %v1271 = vpop.f32.mrf.mxu0
        %v1272 = vadd.f32 0.0, %v1271
        %v1273 = vpop.f32.mrf.mxu0
        %v1274 = vadd.f32 0.0, %v1273
        %1275 = vdwg.mxu0
        %v1276 = vmax.f32 %v1188, %v1237
        %1277 = vmax.xlane.f32.xlu0 %v1276
        %v1278 = vpop.xlane.xlu0 %1277
        %v1279 = vmax.f32 %v1190, %v1239
        %1280 = vmax.xlane.f32.xlu0 %v1279
        %v1281 = vpop.xlane.xlu0 %1280
        %v1282 = vmax.f32 %v1193, %v1242
        %1283 = vmax.xlane.f32.xlu0 %v1282
        %v1284 = vpop.xlane.xlu0 %1283
        %v1285 = vmax.f32 %v1195, %v1244
        %1286 = vmax.xlane.f32.xlu0 %v1285
        %v1287 = vpop.xlane.xlu0 %1286
        %v1288 = vmax.f32 %v1198, %v1247
        %1289 = vmax.xlane.f32.xlu0 %v1288
        %v1290 = vpop.xlane.xlu0 %1289
        %v1291 = vmax.f32 %v1200, %v1249
        %1292 = vmax.xlane.f32.xlu0 %v1291
        %v1293 = vpop.xlane.xlu0 %1292
        %v1294 = vmax.f32 %v1203, %v1252
        %1295 = vmax.xlane.f32.xlu0 %v1294
        %v1296 = vpop.xlane.xlu0 %1295
        %v1297 = vmax.f32 %v1205, %v1254
        %1298 = vmax.xlane.f32.xlu0 %v1297
        %v1299 = vpop.xlane.xlu0 %1298
        %v1300 = vmax.f32 %v1208, %v1257
        %1301 = vmax.xlane.f32.xlu0 %v1300
        %v1302 = vpop.xlane.xlu0 %1301
        %v1303 = vmax.f32 %v1210, %v1259
        %1304 = vmax.xlane.f32.xlu0 %v1303
        %v1305 = vpop.xlane.xlu0 %1304
        %v1306 = vmax.f32 %v1213, %v1262
        %1307 = vmax.xlane.f32.xlu0 %v1306
        %v1308 = vpop.xlane.xlu0 %1307
        %v1309 = vmax.f32 %v1215, %v1264
        %1310 = vmax.xlane.f32.xlu0 %v1309
        %v1311 = vpop.xlane.xlu0 %1310
        %v1312 = vmax.f32 %v1218, %v1267
        %1313 = vmax.xlane.f32.xlu0 %v1312
        %v1314 = vpop.xlane.xlu0 %1313
        %v1315 = vmax.f32 %v1220, %v1269
        %1316 = vmax.xlane.f32.xlu0 %v1315
        %v1317 = vpop.xlane.xlu0 %1316
        %v1318 = vmax.f32 %v1223, %v1272
        %1319 = vmax.xlane.f32.xlu0 %v1318
        %v1320 = vpop.xlane.xlu0 %1319
        %v1321 = vmax.f32 %v1225, %v1274
        %1322 = vmax.xlane.f32.xlu0 %v1321
        %v1323 = vpop.xlane.xlu0 %1322
        %v1324 = vsub.f32 %v1188, %v1278
        %v1325 = vsub.f32 %v1237, %v1278
        %v1326 = vsub.f32 %v1190, %v1281
        %v1327 = vsub.f32 %v1239, %v1281
        %v1328 = vsub.f32 %v1193, %v1284
        %v1329 = vsub.f32 %v1242, %v1284
        %v1330 = vsub.f32 %v1195, %v1287
        %v1331 = vsub.f32 %v1244, %v1287
        %v1332 = vsub.f32 %v1198, %v1290
        %v1333 = vsub.f32 %v1247, %v1290
        %v1334 = vsub.f32 %v1200, %v1293
        %v1335 = vsub.f32 %v1249, %v1293
        %v1336 = vsub.f32 %v1203, %v1296
        %v1337 = vsub.f32 %v1252, %v1296
        %v1338 = vsub.f32 %v1205, %v1299
        %v1339 = vsub.f32 %v1254, %v1299
        %v1340 = vsub.f32 %v1208, %v1302
        %v1341 = vsub.f32 %v1257, %v1302
        %v1342 = vsub.f32 %v1210, %v1305
        %v1343 = vsub.f32 %v1259, %v1305
        %v1344 = vsub.f32 %v1213, %v1308
        %v1345 = vsub.f32 %v1262, %v1308
        %v1346 = vsub.f32 %v1215, %v1311
        %v1347 = vsub.f32 %v1264, %v1311
        %v1348 = vsub.f32 %v1218, %v1314
        %v1349 = vsub.f32 %v1267, %v1314
        %v1350 = vsub.f32 %v1220, %v1317
        %v1351 = vsub.f32 %v1269, %v1317
        %v1352 = vsub.f32 %v1223, %v1320
        %v1353 = vsub.f32 %v1272, %v1320
        %v1354 = vsub.f32 %v1225, %v1323
        %v1355 = vsub.f32 %v1274, %v1323
        %v1356 = vmul.f32 %v1324, 1.442695
        %v1357 = vpow.pop %v1356
        %v1358 = vmul.f32 %v1325, 1.442695
        %v1359 = vpow.pop %v1358
        %v1360 = vmul.f32 %v1326, 1.442695
        %v1361 = vpow.pop %v1360
        %v1362 = vmul.f32 %v1327, 1.442695
        %v1363 = vpow.pop %v1362
        %v1364 = vmul.f32 %v1328, 1.442695
        %v1365 = vpow.pop %v1364
        %v1366 = vmul.f32 %v1329, 1.442695
        %v1367 = vpow.pop %v1366
        %v1368 = vmul.f32 %v1330, 1.442695
        %v1369 = vpow.pop %v1368
        %v1370 = vmul.f32 %v1331, 1.442695
        %v1371 = vpow.pop %v1370
        %v1372 = vmul.f32 %v1332, 1.442695
        %v1373 = vpow.pop %v1372
        %v1374 = vmul.f32 %v1333, 1.442695
        %v1375 = vpow.pop %v1374
        %v1376 = vmul.f32 %v1334, 1.442695
        %v1377 = vpow.pop %v1376
        %v1378 = vmul.f32 %v1335, 1.442695
        %v1379 = vpow.pop %v1378
        %v1380 = vmul.f32 %v1336, 1.442695
        %v1381 = vpow.pop %v1380
        %v1382 = vmul.f32 %v1337, 1.442695
        %v1383 = vpow.pop %v1382
        %v1384 = vmul.f32 %v1338, 1.442695
        %v1385 = vpow.pop %v1384
        %v1386 = vmul.f32 %v1339, 1.442695
        %v1387 = vpow.pop %v1386
        %v1388 = vmul.f32 %v1340, 1.442695
        %v1389 = vpow.pop %v1388
        %v1390 = vmul.f32 %v1341, 1.442695
        %v1391 = vpow.pop %v1390
        %v1392 = vmul.f32 %v1342, 1.442695
        %v1393 = vpow.pop %v1392
        %v1394 = vmul.f32 %v1343, 1.442695
        %v1395 = vpow.pop %v1394
        %v1396 = vmul.f32 %v1344, 1.442695
        %v1397 = vpow.pop %v1396
        %v1398 = vmul.f32 %v1345, 1.442695
        %v1399 = vpow.pop %v1398
        %v1400 = vmul.f32 %v1346, 1.442695
        %v1401 = vpow.pop %v1400
        %v1402 = vmul.f32 %v1347, 1.442695
        %v1403 = vpow.pop %v1402
        %v1404 = vmul.f32 %v1348, 1.442695
        %v1405 = vpow.pop %v1404
        %v1406 = vmul.f32 %v1349, 1.442695
        %v1407 = vpow.pop %v1406
        %v1408 = vmul.f32 %v1350, 1.442695
        %v1409 = vpow.pop %v1408
        %v1410 = vmul.f32 %v1351, 1.442695
        %v1411 = vpow.pop %v1410
        %v1412 = vmul.f32 %v1352, 1.442695
        %v1413 = vpow.pop %v1412
        %v1414 = vmul.f32 %v1353, 1.442695
        %v1415 = vpow.pop %v1414
        %v1416 = vmul.f32 %v1354, 1.442695
        %v1417 = vpow.pop %v1416
        %v1418 = vmul.f32 %v1355, 1.442695
        %v1419 = vpow.pop %v1418
        %v1420 = vadd.f32 %v1357, %v1359
        %1421 = vadd.xlane.f32.xlu0 %v1420
        %v1422 = vpop.xlane.xlu0 %1421
        %v1423 = vadd.f32 %v1361, %v1363
        %1424 = vadd.xlane.f32.xlu0 %v1423
        %v1425 = vpop.xlane.xlu0 %1424
        %v1426 = vadd.f32 %v1365, %v1367
        %1427 = vadd.xlane.f32.xlu0 %v1426
        %v1428 = vpop.xlane.xlu0 %1427
        %v1429 = vadd.f32 %v1369, %v1371
        %1430 = vadd.xlane.f32.xlu0 %v1429
        %v1431 = vpop.xlane.xlu0 %1430
        %v1432 = vadd.f32 %v1373, %v1375
        %1433 = vadd.xlane.f32.xlu0 %v1432
        %v1434 = vpop.xlane.xlu0 %1433
        %v1435 = vadd.f32 %v1377, %v1379
        %1436 = vadd.xlane.f32.xlu0 %v1435
        %v1437 = vpop.xlane.xlu0 %1436
        %v1438 = vadd.f32 %v1381, %v1383
        %1439 = vadd.xlane.f32.xlu0 %v1438
        %v1440 = vpop.xlane.xlu0 %1439
        %v1441 = vadd.f32 %v1385, %v1387
        %1442 = vadd.xlane.f32.xlu0 %v1441
        %v1443 = vpop.xlane.xlu0 %1442
        %v1444 = vadd.f32 %v1389, %v1391
        %1445 = vadd.xlane.f32.xlu0 %v1444
        %v1446 = vpop.xlane.xlu0 %1445
        %v1447 = vadd.f32 %v1393, %v1395
        %1448 = vadd.xlane.f32.xlu0 %v1447
        %v1449 = vpop.xlane.xlu0 %1448
        %v1450 = vadd.f32 %v1397, %v1399
        %1451 = vadd.xlane.f32.xlu0 %v1450
        %v1452 = vpop.xlane.xlu0 %1451
        %v1453 = vadd.f32 %v1401, %v1403
        %1454 = vadd.xlane.f32.xlu0 %v1453
        %v1455 = vpop.xlane.xlu0 %1454
        %v1456 = vadd.f32 %v1405, %v1407
        %1457 = vadd.xlane.f32.xlu0 %v1456
        %v1458 = vpop.xlane.xlu0 %1457
        %v1459 = vadd.f32 %v1409, %v1411
        %1460 = vadd.xlane.f32.xlu0 %v1459
        %v1461 = vpop.xlane.xlu0 %1460
        %v1462 = vadd.f32 %v1413, %v1415
        %1463 = vadd.xlane.f32.xlu0 %v1462
        %v1464 = vpop.xlane.xlu0 %1463
        %v1465 = vadd.f32 %v1417, %v1419
        %1466 = vadd.xlane.f32.xlu0 %v1465
        %v1467 = vpop.xlane.xlu0 %1466
        %v1468 = vrcp.pop %v1422
        %v1469 = vrcp.pop %v1425
        %v1470 = vrcp.pop %v1428
        %v1471 = vrcp.pop %v1431
        %v1472 = vrcp.pop %v1434
        %v1473 = vrcp.pop %v1437
        %v1474 = vrcp.pop %v1440
        %v1475 = vrcp.pop %v1443
        %v1476 = vrcp.pop %v1446
        %v1477 = vrcp.pop %v1449
        %v1478 = vrcp.pop %v1452
        %v1479 = vrcp.pop %v1455
        %v1480 = vrcp.pop %v1458
        %v1481 = vrcp.pop %v1461
        %v1482 = vrcp.pop %v1464
        %v1483 = vrcp.pop %v1467
        %v1484 = vmul.f32 %v1357, %v1468
        %v1485 = vmul.f32 %v1359, %v1468
        %v1486 = vmul.f32 %v1361, %v1469
        %v1487 = vmul.f32 %v1363, %v1469
        %v1488 = vmul.f32 %v1365, %v1470
        %v1489 = vmul.f32 %v1367, %v1470
        %v1490 = vmul.f32 %v1369, %v1471
        %v1491 = vmul.f32 %v1371, %v1471
        %v1492 = vmul.f32 %v1373, %v1472
        %v1493 = vmul.f32 %v1375, %v1472
        %v1494 = vmul.f32 %v1377, %v1473
        %v1495 = vmul.f32 %v1379, %v1473
        %v1496 = vmul.f32 %v1381, %v1474
        %v1497 = vmul.f32 %v1383, %v1474
        %v1498 = vmul.f32 %v1385, %v1475
        %v1499 = vmul.f32 %v1387, %v1475
        %v1500 = vmul.f32 %v1389, %v1476
        %v1501 = vmul.f32 %v1391, %v1476
        %v1502 = vmul.f32 %v1393, %v1477
        %v1503 = vmul.f32 %v1395, %v1477
        %v1504 = vmul.f32 %v1397, %v1478
        %v1505 = vmul.f32 %v1399, %v1478
        %v1506 = vmul.f32 %v1401, %v1479
        %v1507 = vmul.f32 %v1403, %v1479
        %v1508 = vmul.f32 %v1405, %v1480
        %v1509 = vmul.f32 %v1407, %v1480
        %v1510 = vmul.f32 %v1409, %v1481
        %v1511 = vmul.f32 %v1411, %v1481
        %v1512 = vmul.f32 %v1413, %v1482
        %v1513 = vmul.f32 %v1415, %v1482
        %v1514 = vmul.f32 %v1417, %v1483
        %v1515 = vmul.f32 %v1419, %v1483
        %v1516 = vpack.c.bf16 %v1486, %v1484
        %v1517 = vpack.c.bf16 %v1487, %v1485
        %v1518 = vpack.c.bf16 %v1490, %v1488
        %v1519 = vpack.c.bf16 %v1491, %v1489
        %v1520 = vpack.c.bf16 %v1494, %v1492
        %v1521 = vpack.c.bf16 %v1495, %v1493
        %v1522 = vpack.c.bf16 %v1498, %v1496
        %v1523 = vpack.c.bf16 %v1499, %v1497
        %v1524 = vpack.c.bf16 %v1502, %v1500
        %v1525 = vpack.c.bf16 %v1503, %v1501
        %v1526 = vpack.c.bf16 %v1506, %v1504
        %v1527 = vpack.c.bf16 %v1507, %v1505
        %v1528 = vpack.c.bf16 %v1510, %v1508
        %v1529 = vpack.c.bf16 %v1511, %v1509
        %v1530 = vpack.c.bf16 %v1514, %v1512
        %v1531 = vpack.c.bf16 %v1515, %v1513
        %v1532 = vld [vmem:[#allocation3] sm:$0xf]
        %v1533 = vld [vmem:[#allocation3 + $0x4] sm:$0xf]
        %v1534 = vld [vmem:[#allocation3 + $0x8] sm:$0xf]
        %v1535 = vld [vmem:[#allocation3 + $0xc] sm:$0xf]
        %v1536 = vld [vmem:[#allocation3 + $0x10] sm:$0xf]
        %v1537 = vld [vmem:[#allocation3 + $0x14] sm:$0xf]
        %v1538 = vld [vmem:[#allocation3 + $0x18] sm:$0xf]
        %v1539 = vld [vmem:[#allocation3 + $0x1c] sm:$0xf]
        %v1540 = vld [vmem:[#allocation3 + $0x20] sm:$0xf]
        %v1541 = vld [vmem:[#allocation3 + $0x24] sm:$0xf]
        %v1542 = vld [vmem:[#allocation3 + $0x28] sm:$0xf]
        %v1543 = vld [vmem:[#allocation3 + $0x2c] sm:$0xf]
        %v1544 = vld [vmem:[#allocation3 + $0x30] sm:$0xf]
        %v1545 = vld [vmem:[#allocation3 + $0x34] sm:$0xf]
        %v1546 = vld [vmem:[#allocation3 + $0x38] sm:$0xf]
        %v1547 = vld [vmem:[#allocation3 + $0x3c] sm:$0xf]
        %v1548 = vld [vmem:[#allocation3 + $0x40] sm:$0xf]
        %v1549 = vld [vmem:[#allocation3 + $0x44] sm:$0xf]
        %v1550 = vld [vmem:[#allocation3 + $0x48] sm:$0xf]
        %v1551 = vld [vmem:[#allocation3 + $0x4c] sm:$0xf]
        %v1552 = vld [vmem:[#allocation3 + $0x50] sm:$0xf]
        %v1553 = vld [vmem:[#allocation3 + $0x54] sm:$0xf]
        %v1554 = vld [vmem:[#allocation3 + $0x58] sm:$0xf]
        %v1555 = vld [vmem:[#allocation3 + $0x5c] sm:$0xf]
        %v1556 = vld [vmem:[#allocation3 + $0x60] sm:$0xf]
        %v1557 = vld [vmem:[#allocation3 + $0x64] sm:$0xf]
        %v1558 = vld [vmem:[#allocation3 + $0x68] sm:$0xf]
        %v1559 = vld [vmem:[#allocation3 + $0x6c] sm:$0xf]
        %v1560 = vld [vmem:[#allocation3 + $0x70] sm:$0xf]
        %v1561 = vld [vmem:[#allocation3 + $0x74] sm:$0xf]
        %v1562 = vld [vmem:[#allocation3 + $0x78] sm:$0xf]
        %v1563 = vld [vmem:[#allocation3 + $0x7c] sm:$0xf]
        %v1596 = vunpack.c.l.b16 %v1532
        %v1597 = vunpack.c.l.b16 %v1533
        %v1598 = vunpack.c.l.b16 %v1534
        %v1599 = vunpack.c.l.b16 %v1535
        %v1600 = vunpack.c.l.b16 %v1536
        %v1601 = vunpack.c.l.b16 %v1537
        %v1602 = vunpack.c.l.b16 %v1538
        %v1603 = vunpack.c.l.b16 %v1539
        %v1604 = vunpack.c.l.b16 %v1540
        %v1605 = vunpack.c.l.b16 %v1541
        %v1606 = vunpack.c.l.b16 %v1542
        %v1607 = vunpack.c.l.b16 %v1543
        %v1608 = vunpack.c.l.b16 %v1544
        %v1609 = vunpack.c.l.b16 %v1545
        %v1610 = vunpack.c.l.b16 %v1546
        %v1611 = vunpack.c.l.b16 %v1547
        %v1612 = vunpack.c.l.b16 %v1548
        %v1613 = vunpack.c.l.b16 %v1549
        %v1614 = vunpack.c.l.b16 %v1550
        %v1615 = vunpack.c.l.b16 %v1551
        %v1616 = vunpack.c.l.b16 %v1552
        %v1617 = vunpack.c.l.b16 %v1553
        %v1618 = vunpack.c.l.b16 %v1554
        %v1619 = vunpack.c.l.b16 %v1555
        %v1620 = vunpack.c.l.b16 %v1556
        %v1621 = vunpack.c.l.b16 %v1557
        %v1622 = vunpack.c.l.b16 %v1558
        %v1623 = vunpack.c.l.b16 %v1559
        %v1624 = vunpack.c.l.b16 %v1560
        %v1625 = vunpack.c.l.b16 %v1561
        %v1626 = vunpack.c.l.b16 %v1562
        %v1627 = vunpack.c.l.b16 %v1563
        %v1628 = vpack.c.b16 %v1597, %v1596
        %v1629 = vpack.c.b16 %v1599, %v1598
        %v1630 = vpack.c.b16 %v1601, %v1600
        %v1631 = vpack.c.b16 %v1603, %v1602
        %v1632 = vpack.c.b16 %v1605, %v1604
        %v1633 = vpack.c.b16 %v1607, %v1606
        %v1634 = vpack.c.b16 %v1609, %v1608
        %v1635 = vpack.c.b16 %v1611, %v1610
        %v1636 = vpack.c.b16 %v1613, %v1612
        %v1637 = vpack.c.b16 %v1615, %v1614
        %v1638 = vpack.c.b16 %v1617, %v1616
        %v1639 = vpack.c.b16 %v1619, %v1618
        %v1640 = vpack.c.b16 %v1621, %v1620
        %v1641 = vpack.c.b16 %v1623, %v1622
        %v1642 = vpack.c.b16 %v1625, %v1624
        %v1643 = vpack.c.b16 %v1627, %v1626
        %1660 = vmatpush.bf16.msra.mxu0 %v1635
        %1661 = vmatpush.bf16.msra.mxu0 %v1634
        %1662 = vmatpush.bf16.msra.mxu0 %v1633
        %1663 = vmatpush.bf16.msra.mxu0 %v1632
        %1664 = vmatpush.bf16.msra.mxu0 %v1631
        %1665 = vmatpush.bf16.msra.mxu0 %v1630
        %1666 = vmatpush.bf16.msra.mxu0 %v1629
        %1667 = vmatpush.bf16.msra.mxu0 %v1628
        %1668 = vmatmul.bf16.gmra.mxu0 %v1516
        %v1669 = vpop.f32.mrf.mxu0
        %v1670 = vadd.f32 0.0, %v1669
        %v1671 = vpop.f32.mrf.mxu0
        %v1672 = vadd.f32 0.0, %v1671
        %1673 = vmatmul.bf16.gmra.mxu0 %v1518
        %v1674 = vpop.f32.mrf.mxu0
        %v1675 = vadd.f32 0.0, %v1674
        %v1676 = vpop.f32.mrf.mxu0
        %v1677 = vadd.f32 0.0, %v1676
        %1678 = vmatmul.bf16.gmra.mxu0 %v1520
        %v1679 = vpop.f32.mrf.mxu0
        %v1680 = vadd.f32 0.0, %v1679
        %v1681 = vpop.f32.mrf.mxu0
        %v1682 = vadd.f32 0.0, %v1681
        %1683 = vmatmul.bf16.gmra.mxu0 %v1522
        %v1684 = vpop.f32.mrf.mxu0
        %v1685 = vadd.f32 0.0, %v1684
        %v1686 = vpop.f32.mrf.mxu0
        %v1687 = vadd.f32 0.0, %v1686
        %1688 = vmatmul.bf16.gmra.mxu0 %v1524
        %v1689 = vpop.f32.mrf.mxu0
        %v1690 = vadd.f32 0.0, %v1689
        %v1691 = vpop.f32.mrf.mxu0
        %v1692 = vadd.f32 0.0, %v1691
        %1693 = vmatmul.bf16.gmra.mxu0 %v1526
        %v1694 = vpop.f32.mrf.mxu0
        %v1695 = vadd.f32 0.0, %v1694
        %v1696 = vpop.f32.mrf.mxu0
        %v1697 = vadd.f32 0.0, %v1696
        %1698 = vmatmul.bf16.gmra.mxu0 %v1528
        %v1699 = vpop.f32.mrf.mxu0
        %v1700 = vadd.f32 0.0, %v1699
        %v1701 = vpop.f32.mrf.mxu0
        %v1702 = vadd.f32 0.0, %v1701
        %1703 = vmatmul.bf16.gmra.mxu0 %v1530
        %v1704 = vpop.f32.mrf.mxu0
        %v1705 = vadd.f32 0.0, %v1704
        %v1706 = vpop.f32.mrf.mxu0
        %v1707 = vadd.f32 0.0, %v1706
        %1708 = vdwg.mxu0
        %1709 = vmatpush.bf16.msra.mxu0 %v1643
        %1710 = vmatpush.bf16.msra.mxu0 %v1642
        %1711 = vmatpush.bf16.msra.mxu0 %v1641
        %1712 = vmatpush.bf16.msra.mxu0 %v1640
        %1713 = vmatpush.bf16.msra.mxu0 %v1639
        %1714 = vmatpush.bf16.msra.mxu0 %v1638
        %1715 = vmatpush.bf16.msra.mxu0 %v1637
        %1716 = vmatpush.bf16.msra.mxu0 %v1636
        %1717 = vmatmul.bf16.gmra.mxu0 %v1517
        %v1718 = vpop.f32.mrf.mxu0
        %v1719 = vadd.f32 %v1670, %v1718
        %v1720 = vpop.f32.mrf.mxu0
        %v1721 = vadd.f32 %v1672, %v1720
        %1722 = vmatmul.bf16.gmra.mxu0 %v1519
        %v1723 = vpop.f32.mrf.mxu0
        %v1724 = vadd.f32 %v1675, %v1723
        %v1725 = vpop.f32.mrf.mxu0
        %v1726 = vadd.f32 %v1677, %v1725
        %1727 = vmatmul.bf16.gmra.mxu0 %v1521
        %v1728 = vpop.f32.mrf.mxu0
        %v1729 = vadd.f32 %v1680, %v1728
        %v1730 = vpop.f32.mrf.mxu0
        %v1731 = vadd.f32 %v1682, %v1730
        %1732 = vmatmul.bf16.gmra.mxu0 %v1523
        %v1733 = vpop.f32.mrf.mxu0
        %v1734 = vadd.f32 %v1685, %v1733
        %v1735 = vpop.f32.mrf.mxu0
        %v1736 = vadd.f32 %v1687, %v1735
        %1737 = vmatmul.bf16.gmra.mxu0 %v1525
        %v1738 = vpop.f32.mrf.mxu0
        %v1739 = vadd.f32 %v1690, %v1738
        %v1740 = vpop.f32.mrf.mxu0
        %v1741 = vadd.f32 %v1692, %v1740
        %1742 = vmatmul.bf16.gmra.mxu0 %v1527
        %v1743 = vpop.f32.mrf.mxu0
        %v1744 = vadd.f32 %v1695, %v1743
        %v1745 = vpop.f32.mrf.mxu0
        %v1746 = vadd.f32 %v1697, %v1745
        %1747 = vmatmul.bf16.gmra.mxu0 %v1529
        %v1748 = vpop.f32.mrf.mxu0
        %v1749 = vadd.f32 %v1700, %v1748
        %v1750 = vpop.f32.mrf.mxu0
        %v1751 = vadd.f32 %v1702, %v1750
        %1752 = vmatmul.bf16.gmra.mxu0 %v1531
        %v1753 = vpop.f32.mrf.mxu0
        %v1754 = vadd.f32 %v1705, %v1753
        %v1755 = vpop.f32.mrf.mxu0
        %v1756 = vadd.f32 %v1707, %v1755
        %1757 = vdwg.mxu0
        %v1758 = vld [vmem:[%s7] sm:$0x3]
        %v1759 = vpack.c.bf16 %v1721, %v1719
        %v1760 = vpack.c.bf16 %v1726, %v1724
        %v1761 = vpack.c.bf16 %v1731, %v1729
        %v1762 = vpack.c.bf16 %v1736, %v1734
        %v1763 = vpack.c.bf16 %v1741, %v1739
        %v1764 = vpack.c.bf16 %v1746, %v1744
        %v1765 = vpack.c.bf16 %v1751, %v1749
        %v1766 = vpack.c.bf16 %v1756, %v1754
        %v1767 = vld [vmem:[%s8] sm:$0xf]
        %1769 = vset.pattern.permute.xlu0 0
        %1770 = vperm.xlu0 %1769, %v1767
        %v1771 = vpop.permute.xlu0 %1770
        %v1774 = vsel %vm1105, %v1758, 0
        %v1777 = vsel %vm1105, %v1759, 0
        %v1780 = vsel %vm1105, %v1760, 0
        %v1783 = vsel %vm1105, %v1761, 0
        %v1786 = vsel %vm1105, %v1762, 0
        %v1789 = vsel %vm1105, %v1763, 0
        %v1792 = vsel %vm1105, %v1764, 0
        %v1795 = vsel %vm1105, %v1765, 0
        %v1798 = vsel %vm1105, %v1766, 0
        %1800 = vmatpush.bf16.xpose.msra.mxu0 %v1798
        %1801 = vmatpush.bf16.xpose.msra.mxu0 %v1795
        %1802 = vmatpush.bf16.xpose.msra.mxu0 %v1792
        %1803 = vmatpush.bf16.xpose.msra.mxu0 %v1789
        %1804 = vmatpush.bf16.xpose.msra.mxu0 %v1786
        %1805 = vmatpush.bf16.xpose.msra.mxu0 %v1783
        %1806 = vmatpush.bf16.xpose.msra.mxu0 %v1780
        %1807 = vmatpush.bf16.xpose.msra.mxu0 %v1777
        %1808 = vmatmul.bf16.gmra.mxu0 %v1774
        %v1809 = vpop.f32.mrf.mxu0
        %v1810 = vadd.f32 %v1771, %v1809
        %v1811 = vpop.f32.mrf.mxu0
        %1812 = vdwg.mxu0
        %v1813 = vld [vmem:[%s451] sm:$0xf]
        %v1814 = vadd.f32 %v1810, %v1813
        %1815 = vst [vmem:[%s421] sm:$0xf] %v1814
        %1816 = vst [vmem:[%s428] sm:$0xff] %v1484
        %1817 = vst [vmem:[%s428 + $0x8] sm:$0xff] %v1485
        %1818 = vst [vmem:[%s428 + $0x10] sm:$0xff] %v1486
        %1819 = vst [vmem:[%s428 + $0x18] sm:$0xff] %v1487
        %1820 = vst [vmem:[%s428 + $0x20] sm:$0xff] %v1488
        %1821 = vst [vmem:[%s428 + $0x28] sm:$0xff] %v1489
        %1822 = vst [vmem:[%s428 + $0x30] sm:$0xff] %v1490
        %1823 = vst [vmem:[%s428 + $0x38] sm:$0xff] %v1491
        %1824 = vst [vmem:[%s428 + $0x40] sm:$0xff] %v1492
        %1825 = vst [vmem:[%s428 + $0x48] sm:$0xff] %v1493
        %1826 = vst [vmem:[%s428 + $0x50] sm:$0xff] %v1494
        %1827 = vst [vmem:[%s428 + $0x58] sm:$0xff] %v1495
        %1828 = vst [vmem:[%s428 + $0x60] sm:$0xff] %v1496
        %1829 = vst [vmem:[%s428 + $0x68] sm:$0xff] %v1497
        %1830 = vst [vmem:[%s428 + $0x70] sm:$0xff] %v1498
        %1831 = vst [vmem:[%s428 + $0x78] sm:$0xff] %v1499
        %1832 = vst [vmem:[%s428 + $0x80] sm:$0xff] %v1500
        %1833 = vst [vmem:[%s428 + $0x88] sm:$0xff] %v1501
        %1834 = vst [vmem:[%s428 + $0x90] sm:$0xff] %v1502
        %1835 = vst [vmem:[%s428 + $0x98] sm:$0xff] %v1503
        %1836 = vst [vmem:[%s428 + $0xa0] sm:$0xff] %v1504
        %1837 = vst [vmem:[%s428 + $0xa8] sm:$0xff] %v1505
        %1838 = vst [vmem:[%s428 + $0xb0] sm:$0xff] %v1506
        %1839 = vst [vmem:[%s428 + $0xb8] sm:$0xff] %v1507
        %1840 = vst [vmem:[%s428 + $0xc0] sm:$0xff] %v1508
        %1841 = vst [vmem:[%s428 + $0xc8] sm:$0xff] %v1509
        %1842 = vst [vmem:[%s428 + $0xd0] sm:$0xff] %v1510
        %1843 = vst [vmem:[%s428 + $0xd8] sm:$0xff] %v1511
        %1844 = vst [vmem:[%s428 + $0xe0] sm:$0xff] %v1512
        %1845 = vst [vmem:[%s428 + $0xe8] sm:$0xff] %v1513
        %1846 = vst [vmem:[%s428 + $0xf0] sm:$0xff] %v1514
        %1847 = vst [vmem:[%s428 + $0xf8] sm:$0xff] %v1515
        %s1848 = sand.u32 %s258, 1
        %s1849 = scalar_lea.sflag [#allocation5], %s1848
        %s1850 = sand.u32 %s258, 1
        %s1851 = smul.addr %s1850, 4
        %s1852 = scalar_lea.vmem [#allocation4], %s1851
        %s1853 = sand.u32 %s286, 1
        %s1854 = scalar_lea.sflag [#allocation7], %s1853
        %s1855 = sand.u32 %s286, 1
        %s1856 = smul.addr %s1855, 256
        %s1857 = scalar_lea.vmem [#allocation6], %s1856
        // Predicated region
        $region61: #{tpu_custom_call.1} parent=55 // pred_check
          %p1858 = pneg %p268
        $region62: #{tpu_custom_call.1} parent=55 // pred_check_branch
          %1860 = sbr.rel (%p1858) target = $region64
        $region63: #{tpu_custom_call.1} parent=55 // pred_region
          %1862 = vsyncadd %s1849, 0
          %s1863 = smul.addr %s32, 2
          %s1864 = sadd.s32 %s33, %s1863
          %s1865 = smul.addr %s1864, 4
          %s1866 = scalar_lea.hbm %s9, %s1865
          %s1868 = sshll.u32 %s1852, 4
          %s1869 = int_to_ptr.vmem [resolvable:$true] %s1868
          %s1870 = sshll.u32 %s1866, 4
          %s1871 = int_to_ptr.hbm [resolvable:$true] %s1870
          %1873 = dma.vmem_to_hbm [thread:$0]  %s1869, 64, %s1871, %s1849
        $region64: #{tpu_custom_call.1} parent=55 // pred_fallthru
          _
        // Predicated region
        $region65: #{tpu_custom_call.1} parent=55 // pred_check
          %p1874 = pneg %p296
        $region66: #{tpu_custom_call.1} parent=55 // pred_check_branch
          %1876 = sbr.rel (%p1874) target = $region68
        $region67: #{tpu_custom_call.1} parent=55 // pred_region
          %s1877 = smul.u32 16, %s33
          %1879 = vsyncadd %s1854, 0
          %s1880 = smul.addr %s1877, 2
          %s1881 = smul.addr %s32, 64
          %s1882 = sadd.s32 %s1880, %s1881
          %s1883 = smul.addr %s1882, 8
          %s1884 = scalar_lea.hbm %s10, %s1883
          %s1885 = sshll.u32 %s1857, 4
          %s1886 = int_to_ptr.vmem [resolvable:$true] %s1885
          %s1887 = sshll.u32 %s1884, 4
          %s1888 = int_to_ptr.hbm [resolvable:$true] %s1887
          %1893 = dma.vmem_to_hbm [thread:$0]  %s1886, 4096, %s1888, %s1854, 256, 256, 16
        $region68: #{tpu_custom_call.1} parent=55 // pred_fallthru
          _
      $region56: #{tpu_custom_call.1} parent=5 // pred_fallthru
        _
      %p1894 = scmp.le.s32.totalorder 2, %s23
      // Predicated region
      $region69: #{tpu_custom_call.1} parent=5 // pred_check
        %p1895 = pneg %p1894
      $region70: #{tpu_custom_call.1} parent=5 // pred_check_branch
        %1897 = sbr.rel (%p1895) target = $region72
      $region71: #{tpu_custom_call.1} parent=5 // pred_region
        %s1898 = ssub.s32 %s23, 2
        // Predicated region
        $region73: #{tpu_custom_call.1} parent=71 // pred_check
          %p1899 = pneg %p274
        $region74: #{tpu_custom_call.1} parent=71 // pred_check_branch
          %1901 = sbr.rel (%p1899) target = $region76
        $region75: #{tpu_custom_call.1} parent=71 // pred_region
          %s1902 = sand.u32 %s259, 1
          %s1903 = scalar_lea.sflag [#allocation5], %s1902
          %s1904 = sand.u32 %s259, 1
          %s1905 = smul.addr %s1904, 4
          %s1906 = scalar_lea.vmem [#allocation4], %s1905
          %1908 = dma.done %s1903, 64
        $region76: #{tpu_custom_call.1} parent=71 // pred_fallthru
          _
        // Predicated region
        $region77: #{tpu_custom_call.1} parent=71 // pred_check
          %p1909 = pneg %p302
        $region78: #{tpu_custom_call.1} parent=71 // pred_check_branch
          %1911 = sbr.rel (%p1909) target = $region80
        $region79: #{tpu_custom_call.1} parent=71 // pred_region
          %s1912 = sand.u32 %s287, 1
          %s1913 = scalar_lea.sflag [#allocation7], %s1912
          %s1914 = sand.u32 %s287, 1
          %s1915 = smul.addr %s1914, 256
          %s1916 = scalar_lea.vmem [#allocation6], %s1915
          %1918 = dma.done %s1913, 4096
        $region80: #{tpu_custom_call.1} parent=71 // pred_fallthru
          _
      $region72: #{tpu_custom_call.1} parent=5 // pred_fallthru
        _
    $region6: #{tpu_custom_call.1} parent=1 // loop_footer
      %s27 = sadd.s32 1, %s23
    $region7: #{tpu_custom_call.1} parent=1 // loop_footer_branch
      %22 = sbr.rel target = $region3
    $region8: #{tpu_custom_call.1} parent=1 // loop_exit
      _
    %1919 = vsyncpa [#allocation5], 1
    %s1920 = scalar_lea.sflag [#allocation5], 1
    %1921 = vsyncpa %s1920, 1
    %1922 = vsyncpa [#allocation7], 1
    %s1923 = scalar_lea.sflag [#allocation7], 1
    %1924 = vsyncpa %s1923, 1

</llo_original>
